<compile_context>
chip_gen: v7x
topology: tpu7x:2x2x1
jax: 0.10.0
libtpu: 0.0.40
codegen_flags: <defaults>
</compile_context>

<pallas_src>
import functools

import jax
import jax.numpy as jnp
from jax.experimental import pallas as pl
from jax.experimental.pallas import tpu as pltpu


def _round_up(x, m):
    return -(-x // m) * m


def _pick_block_batch(batch, t_video, t_audio, feat, ncls,
                      in_itemsize, out_itemsize,
                      vmem_budget_bytes=10 * 1024 * 1024,
                      min_grid_steps=8):
    """Batch rows per grid step.

    Budgeted with the real padded VMEM layout (lanes -> 128, sublanes -> 8 for
    f32 / 16 for bf16), double-buffered pipeline I/O plus in-kernel f32
    intermediates, and capped so the grid keeps several steps (megacore
    sharding on v7x, DMA/compute overlap) whenever the batch allows it.
    """
    LANE = 128

    def tile(rows, cols, itemsize):
        sub = 8 * (4 // itemsize)
        return (_round_up(max(rows, 1), sub)
                * _round_up(max(cols, 1), LANE) * itemsize)

    # Double-buffered pipeline I/O per batch row (both modalities).
    x_row = tile(t_video, feat, in_itemsize) + tile(t_audio, feat, in_itemsize)
    sl_row = tile(t_video, ncls, out_itemsize) + tile(t_audio, ncls, out_itemsize)
    vl_row = 2 * _round_up(ncls, LANE) * 4            # f32; sublane pad amortized
    io_row = 2 * (x_row + sl_row + vl_row)
    # In-kernel f32 intermediates (matmul out, exp, weights) + broadcast weight.
    scratch_row = (tile(feat, 2 * ncls, in_itemsize)
                   + 3 * (tile(t_video, 2 * ncls, 4) + tile(t_audio, 2 * ncls, 4)))
    per_row = io_row + scratch_row
    cap = max(1, vmem_budget_bytes // per_row)

    if batch <= 8:
        return batch                           # block == full dim (valid layout)
    target = max(8, batch // min_grid_steps)   # aim for >= min_grid_steps steps
    bb = min(cap, target)
    if bb >= batch:
        return batch
    return max(8, (bb // 8) * 8)               # multiple of 8 (sublane rule)


def _tap_kernel(xv_ref, xa_ref, w_ref, b_ref,
                vlv_ref, vla_ref, slv_ref, sla_ref):
    """One grid step: Bb batch rows of BOTH modalities.

    xv_ref:  (Bb, Tv, D)   video snippet embeddings (matmul dtype)
    xa_ref:  (Bb, Ta, D)   audio snippet embeddings (matmul dtype)
    w_ref:   (D, 2C)       fused [sl_fc | vl_fc] weight, transposed
    b_ref:   (1, 1, 2C)    fused bias (f32)
    vl*_ref: (Bb, C)       video-level predictions (f32)
    sl*_ref: (Bb, T, C)    snippet-level sigmoid predictions (out dtype)
    """
    w = w_ref[...]
    b = b_ref[...]
    num_classes = vlv_ref.shape[-1]

    def one_modality(x_ref, vl_ref, sl_ref):
        blk_b = x_ref.shape[0]
        # Single fused MXU matmul for sl_fc and vl_fc, f32 accumulation.
        wb = jnp.broadcast_to(w, (blk_b,) + w.shape)              # (Bb, D, 2C)
        out = jnp.einsum("btd,bdc->btc", x_ref[...], wb,
                         preferred_element_type=jnp.float32) + b  # (Bb, T, 2C) f32
        sl_out = out[..., :num_classes]          # pre-sigmoid snippet logits
        vl_out = out[..., num_classes:]          # attention logits

        # Numerically-stable softmax over the (un-padded) snippet axis.
        m = jnp.max(vl_out, axis=1, keepdims=True)                # (Bb, 1, C)
        e = jnp.exp(vl_out - m)                                   # (Bb, T, C)
        weights = e / jnp.sum(e, axis=1, keepdims=True)           # exact denom

        # Attention-weighted temporal pooling of the pre-sigmoid sl logits.
        vl_ref[...] = jnp.sum(weights * sl_out, axis=1).astype(vl_ref.dtype)
        sl_ref[...] = jax.nn.sigmoid(sl_out).astype(sl_ref.dtype)

    one_modality(xv_ref, vlv_ref, slv_ref)
    one_modality(xa_ref, vla_ref, sla_ref)


@functools.partial(jax.jit, static_argnames=("matmul_dtype", "out_dtype"))
def tap_forward(video_snippet_embeddings, audio_snippet_embeddings,
                w_sl, b_sl, w_vl, b_vl, *,
                matmul_dtype=jnp.bfloat16, out_dtype=jnp.bfloat16):
    """TAP forward pass — one fused Pallas kernel for both modalities.

    Weights use PyTorch Linear layout: w_* is (num_classes, feature_dim),
    b_* is (num_classes,).  matmul_dtype / out_dtype default to bfloat16
    (halves the dominant HBM read/write streams); pass jnp.float32 for an
    exact path.  All accumulation / softmax / sigmoid math is f32; vl outputs
    are always f32.
    """
    B, Tv, D = video_snippet_embeddings.shape
    Ba, Ta, Da = audio_snippet_embeddings.shape
    assert B == Ba and D == Da
    C = w_sl.shape[0]

    # Fuse the two Linear layers: one (D, 2C) weight, one (1, 1, 2C) bias.
    w_fused = jnp.concatenate([w_sl.T, w_vl.T], axis=1).astype(matmul_dtype)
    b_fused = jnp.concatenate([b_sl, b_vl]).reshape(1, 1, 2 * C).astype(jnp.float32)

    # The ONLY materialization of x (a no-op when matmul_dtype == input dtype).
    xv = video_snippet_embeddings.astype(matmul_dtype)
    xa = audio_snippet_embeddings.astype(matmul_dtype)

    bb = _pick_block_batch(B, Tv, Ta, D, C,
                           jnp.dtype(matmul_dtype).itemsize,
                           jnp.dtype(out_dtype).itemsize)
    grid = (pl.cdiv(B, bb),)   # partial last block: OOB rows are discarded

    vlv, vla, slv, sla = pl.pallas_call(
        _tap_kernel,
        out_shape=(
            jax.ShapeDtypeStruct((B, C), jnp.float32),
            jax.ShapeDtypeStruct((B, C), jnp.float32),
            jax.ShapeDtypeStruct((B, Tv, C), out_dtype),
            jax.ShapeDtypeStruct((B, Ta, C), out_dtype),
        ),
        grid_spec=pltpu.PrefetchScalarGridSpec(
            num_scalar_prefetch=0,
            grid=grid,
            in_specs=[
                pl.BlockSpec((bb, Tv, D), lambda i: (i, 0, 0)),
                pl.BlockSpec((bb, Ta, D), lambda i: (i, 0, 0)),
                pl.BlockSpec((D, 2 * C), lambda i: (0, 0)),
                pl.BlockSpec((1, 1, 2 * C), lambda i: (0, 0, 0)),
            ],
            out_specs=[
                pl.BlockSpec((bb, C), lambda i: (i, 0)),
                pl.BlockSpec((bb, C), lambda i: (i, 0)),
                pl.BlockSpec((bb, Tv, C), lambda i: (i, 0, 0)),
                pl.BlockSpec((bb, Ta, C), lambda i: (i, 0, 0)),
            ],
        ),
        compiler_params=pltpu.CompilerParams(
            dimension_semantics=("parallel",),     # batch blocks shard across TCs
            vmem_limit_bytes=32 * 1024 * 1024,     # safe on v5e / v6e / v7x
        ),
    )(xv, xa, w_fused, b_fused)

    # TODO(synk): the PyTorch module also returns the sl_fc nn.Module handle;
    # there is no Pallas/JAX equivalent of returning a layer object.
    return vlv, vla, slv, sla


def _reference_forward(video, audio, w_sl, b_sl, w_vl, b_vl):
    """Pure-JAX reference matching the PyTorch semantics exactly."""
    def one(x):
        sl_out = x @ w_sl.T + b_sl
        vl_out = x @ w_vl.T + b_vl
        w = jax.nn.softmax(vl_out, axis=1)       # softmax over snippets
        return jnp.sum(w * sl_out, axis=1), jax.nn.sigmoid(sl_out)
    vl_v, sl_v = one(video)
    vl_a, sl_a = one(audio)
    return vl_v, vl_a, sl_v, sl_a


if __name__ == "__main__":
    key = jax.random.PRNGKey(0)
    k1, k2, k3, k4, k5, k6 = jax.random.split(key, 6)

    batch = 16                   # small, but enough for a 2-step grid (bb = 8)
    num_video_snippets = 8
    num_audio_snippets = 6
    feature_dim = 32
    num_classes = 16

    video = jax.random.normal(
        k1, (batch, num_video_snippets, feature_dim), jnp.float32)
    audio = jax.random.normal(
        k2, (batch, num_audio_snippets, feature_dim), jnp.float32)

    # PyTorch Linear layout: weight (out, in), bias (out,).
    scale = 1.0 / jnp.sqrt(jnp.float32(feature_dim))
    w_sl = jax.random.uniform(
        k3, (num_classes, feature_dim), jnp.float32, -scale, scale)
    b_sl = jax.random.uniform(k4, (num_classes,), jnp.float32, -scale, scale)
    w_vl = jax.random.uniform(
        k5, (num_classes, feature_dim), jnp.float32, -scale, scale)
    b_vl = jax.random.uniform(k6, (num_classes,), jnp.float32, -scale, scale)

    ref = _reference_forward(video, audio, w_sl, b_sl, w_vl, b_vl)

    # Default path: bf16 x-read / sl-write streams, f32 math inside.
    outs = jax.block_until_ready(
        tap_forward(video, audio, w_sl, b_sl, w_vl, b_vl))
    vl_video, vl_audio, sl_video, sl_audio = outs
    assert vl_video.shape == (batch, num_classes)
    assert vl_audio.shape == (batch, num_classes)
    assert sl_video.shape == (batch, num_video_snippets, num_classes)
    assert sl_audio.shape == (batch, num_audio_snippets, num_classes)
    for got, want in zip(outs, ref):
        got32 = got.astype(jnp.float32)
        assert jnp.allclose(got32, want, atol=5e-2, rtol=5e-2), (
            float(jnp.max(jnp.abs(got32 - want))))

    # Exact path: f32 streams everywhere (tight check, exact softmax denom).
    outs_f32 = jax.block_until_ready(
        tap_forward(video, audio, w_sl, b_sl, w_vl, b_vl,
                    matmul_dtype=jnp.float32, out_dtype=jnp.float32))
    for got, want in zip(outs_f32, ref):
        assert got.shape == want.shape, (got.shape, want.shape)
        assert jnp.allclose(got, want, atol=2e-3, rtol=2e-3), (
            float(jnp.max(jnp.abs(got - want))))

    print("KERNEL_OK")
</pallas_src>

<mosaic_0001>
module attributes {stable_mosaic.version = 11 : i64} {
  func.func @_tap_kernel(%arg0: i32, %arg1: memref<8x8x32xbf16, #tpu.memory_space<vmem>>, %arg2: memref<8x6x32xbf16, #tpu.memory_space<vmem>>, %arg3: memref<32x32xbf16, #tpu.memory_space<vmem>>, %arg4: memref<1x1x32xf32, #tpu.memory_space<vmem>>, %arg5: memref<8x16xf32, #tpu.memory_space<vmem>>, %arg6: memref<8x16xf32, #tpu.memory_space<vmem>>, %arg7: memref<8x8x16xbf16, #tpu.memory_space<vmem>>, %arg8: memref<8x6x16xbf16, #tpu.memory_space<vmem>>) attributes {dimension_semantics = [#tpu.dimension_semantics<parallel>], iteration_bounds = array<i64: 2>, scalar_prefetch = 0 : i64, scratch_operands = 0 : i64, tpu.core_type = #tpu.core_type<tc>, window_params = [{transform_indices = @transform_0, window_bounds = array<i64: 8, 8, 32>}, {transform_indices = @transform_1, window_bounds = array<i64: 8, 6, 32>}, {pipeline_mode = #tpu.pipeline_mode<synchronous>, transform_indices = @transform_2, window_bounds = array<i64: 32, 32>}, {pipeline_mode = #tpu.pipeline_mode<synchronous>, transform_indices = @transform_3, window_bounds = array<i64: 1, 1, 32>}, {transform_indices = @transform_4, window_bounds = array<i64: 8, 16>}, {transform_indices = @transform_5, window_bounds = array<i64: 8, 16>}, {transform_indices = @transform_6, window_bounds = array<i64: 8, 8, 16>}, {transform_indices = @transform_7, window_bounds = array<i64: 8, 6, 16>}]} {
    %c0 = arith.constant 0 : index
    %c0_0 = arith.constant 0 : index
    %0 = vector.load %arg3[%c0, %c0_0] : memref<32x32xbf16, #tpu.memory_space<vmem>>, vector<32x32xbf16>
    %c0_1 = arith.constant 0 : index
    %c0_2 = arith.constant 0 : index
    %c0_3 = arith.constant 0 : index
    %1 = vector.load %arg4[%c0_1, %c0_2, %c0_3] : memref<1x1x32xf32, #tpu.memory_space<vmem>>, vector<1x1x32xf32>
    %2 = vector.shape_cast %0 : vector<32x32xbf16> to vector<1x32x32xbf16>
    %3 = vector.broadcast %2 : vector<1x32x32xbf16> to vector<8x32x32xbf16>
    %c0_4 = arith.constant 0 : index
    %c0_5 = arith.constant 0 : index
    %c0_6 = arith.constant 0 : index
    %4 = vector.load %arg1[%c0_4, %c0_5, %c0_6] : memref<8x8x32xbf16, #tpu.memory_space<vmem>>, vector<8x8x32xbf16>
    "tpu.trace_start"() <{level = 10 : i32, message = "btd,bdc->btc"}> : () -> ()
    %cst = arith.constant dense<0.000000e+00> : vector<8x8x32xf32>
    %5 = tpu.matmul %4, %3, %cst {dimension_numbers = #tpu.dot_dimension_numbers<[2], [1], [1], [2], [0, 0, 0, 1, 1, 2], [0], [0]>} : vector<8x8x32xbf16>, vector<8x32x32xbf16>, vector<8x8x32xf32> -> vector<8x8x32xf32>
    "tpu.trace_stop"() : () -> ()
    %6 = vector.broadcast %1 : vector<1x1x32xf32> to vector<8x8x32xf32>
    %7 = arith.addf %5, %6 : vector<8x8x32xf32>
    %8 = vector.extract_strided_slice %7 {offsets = [0, 0, 0], sizes = [8, 8, 16], strides = [1, 1, 1]} : vector<8x8x32xf32> to vector<8x8x16xf32>
    %9 = vector.extract_strided_slice %7 {offsets = [0, 0, 16], sizes = [8, 8, 16], strides = [1, 1, 1]} : vector<8x8x32xf32> to vector<8x8x16xf32>
    %cst_7 = arith.constant dense<0xFF800000> : vector<8x16xf32>
    %10 = vector.multi_reduction <maximumf>, %9, %cst_7 [1] : vector<8x8x16xf32> to vector<8x16xf32>
    %11 = vector.shape_cast %10 : vector<8x16xf32> to vector<8x1x16xf32>
    %12 = vector.broadcast %11 : vector<8x1x16xf32> to vector<8x8x16xf32>
    %13 = arith.subf %9, %12 : vector<8x8x16xf32>
    %14 = math.exp %13 : vector<8x8x16xf32>
    %cst_8 = arith.constant dense<0.000000e+00> : vector<8x16xf32>
    %15 = vector.multi_reduction <add>, %14, %cst_8 [1] : vector<8x8x16xf32> to vector<8x16xf32>
    %16 = vector.shape_cast %15 : vector<8x16xf32> to vector<8x1x16xf32>
    %17 = vector.broadcast %16 : vector<8x1x16xf32> to vector<8x8x16xf32>
    %18 = arith.divf %14, %17 : vector<8x8x16xf32>
    %19 = arith.mulf %18, %8 : vector<8x8x16xf32>
    %cst_9 = arith.constant dense<0.000000e+00> : vector<8x16xf32>
    %20 = vector.multi_reduction <add>, %19, %cst_9 [1] : vector<8x8x16xf32> to vector<8x16xf32>
    %c0_10 = arith.constant 0 : index
    %c0_11 = arith.constant 0 : index
    %21 = vector.load %arg5[%c0_10, %c0_11] : memref<8x16xf32, #tpu.memory_space<vmem>>, vector<8x16xf32>
    tpu.vector_store %arg5[%c0_10, %c0_11], %20 {strides = array<i32>} : memref<8x16xf32, #tpu.memory_space<vmem>>, vector<8x16xf32>,
    %22 = arith.negf %8 : vector<8x8x16xf32>
    %23 = math.exp %22 : vector<8x8x16xf32>
    %cst_12 = arith.constant 1.000000e+00 : f32
    %24 = vector.broadcast %cst_12 : f32 to vector<8x8x16xf32>
    %25 = arith.addf %24, %23 : vector<8x8x16xf32>
    %26 = arith.divf %24, %25 : vector<8x8x16xf32>
    %27 = arith.truncf %26 : vector<8x8x16xf32> to vector<8x8x16xbf16>
    %c0_13 = arith.constant 0 : index
    %c0_14 = arith.constant 0 : index
    %c0_15 = arith.constant 0 : index
    %28 = vector.load %arg7[%c0_13, %c0_14, %c0_15] : memref<8x8x16xbf16, #tpu.memory_space<vmem>>, vector<8x8x16xbf16>
    tpu.vector_store %arg7[%c0_13, %c0_14, %c0_15], %27 {strides = array<i32>} : memref<8x8x16xbf16, #tpu.memory_space<vmem>>, vector<8x8x16xbf16>,
    %29 = vector.shape_cast %0 : vector<32x32xbf16> to vector<1x32x32xbf16>
    %30 = vector.broadcast %29 : vector<1x32x32xbf16> to vector<8x32x32xbf16>
    %c0_16 = arith.constant 0 : index
    %c0_17 = arith.constant 0 : index
    %c0_18 = arith.constant 0 : index
    %31 = vector.load %arg2[%c0_16, %c0_17, %c0_18] : memref<8x6x32xbf16, #tpu.memory_space<vmem>>, vector<8x6x32xbf16>
    "tpu.trace_start"() <{level = 10 : i32, message = "btd,bdc->btc"}> : () -> ()
    %cst_19 = arith.constant dense<0.000000e+00> : vector<8x6x32xf32>
    %32 = tpu.matmul %31, %30, %cst_19 {dimension_numbers = #tpu.dot_dimension_numbers<[2], [1], [1], [2], [0, 0, 0, 1, 1, 2], [0], [0]>} : vector<8x6x32xbf16>, vector<8x32x32xbf16>, vector<8x6x32xf32> -> vector<8x6x32xf32>
    "tpu.trace_stop"() : () -> ()
    %33 = vector.broadcast %1 : vector<1x1x32xf32> to vector<8x6x32xf32>
    %34 = arith.addf %32, %33 : vector<8x6x32xf32>
    %35 = vector.extract_strided_slice %34 {offsets = [0, 0, 0], sizes = [8, 6, 16], strides = [1, 1, 1]} : vector<8x6x32xf32> to vector<8x6x16xf32>
    %36 = vector.extract_strided_slice %34 {offsets = [0, 0, 16], sizes = [8, 6, 16], strides = [1, 1, 1]} : vector<8x6x32xf32> to vector<8x6x16xf32>
    %cst_20 = arith.constant dense<0xFF800000> : vector<8x16xf32>
    %37 = vector.multi_reduction <maximumf>, %36, %cst_20 [1] : vector<8x6x16xf32> to vector<8x16xf32>
    %38 = vector.shape_cast %37 : vector<8x16xf32> to vector<8x1x16xf32>
    %39 = vector.broadcast %38 : vector<8x1x16xf32> to vector<8x6x16xf32>
    %40 = arith.subf %36, %39 : vector<8x6x16xf32>
    %41 = math.exp %40 : vector<8x6x16xf32>
    %cst_21 = arith.constant dense<0.000000e+00> : vector<8x16xf32>
    %42 = vector.multi_reduction <add>, %41, %cst_21 [1] : vector<8x6x16xf32> to vector<8x16xf32>
    %43 = vector.shape_cast %42 : vector<8x16xf32> to vector<8x1x16xf32>
    %44 = vector.broadcast %43 : vector<8x1x16xf32> to vector<8x6x16xf32>
    %45 = arith.divf %41, %44 : vector<8x6x16xf32>
    %46 = arith.mulf %45, %35 : vector<8x6x16xf32>
    %cst_22 = arith.constant dense<0.000000e+00> : vector<8x16xf32>
    %47 = vector.multi_reduction <add>, %46, %cst_22 [1] : vector<8x6x16xf32> to vector<8x16xf32>
    %c0_23 = arith.constant 0 : index
    %c0_24 = arith.constant 0 : index
    %48 = vector.load %arg6[%c0_23, %c0_24] : memref<8x16xf32, #tpu.memory_space<vmem>>, vector<8x16xf32>
    tpu.vector_store %arg6[%c0_23, %c0_24], %47 {strides = array<i32>} : memref<8x16xf32, #tpu.memory_space<vmem>>, vector<8x16xf32>,
    %49 = arith.negf %35 : vector<8x6x16xf32>
    %50 = math.exp %49 : vector<8x6x16xf32>
    %cst_25 = arith.constant 1.000000e+00 : f32
    %51 = vector.broadcast %cst_25 : f32 to vector<8x6x16xf32>
    %52 = arith.addf %51, %50 : vector<8x6x16xf32>
    %53 = arith.divf %51, %52 : vector<8x6x16xf32>
    %54 = arith.truncf %53 : vector<8x6x16xf32> to vector<8x6x16xbf16>
    %c0_26 = arith.constant 0 : index
    %c0_27 = arith.constant 0 : index
    %c0_28 = arith.constant 0 : index
    %55 = vector.load %arg8[%c0_26, %c0_27, %c0_28] : memref<8x6x16xbf16, #tpu.memory_space<vmem>>, vector<8x6x16xbf16>
    tpu.vector_store %arg8[%c0_26, %c0_27, %c0_28], %54 {strides = array<i32>} : memref<8x6x16xbf16, #tpu.memory_space<vmem>>, vector<8x6x16xbf16>,
    return
  }
  func.func @transform_0(%arg0: i32) -> (i32, i32, i32) {
    %c0_i32 = arith.constant 0 : i32
    %c0_i32_0 = arith.constant 0 : i32
    %c0_i32_1 = arith.constant 0 : i32
    return %arg0, %c0_i32, %c0_i32_0 : i32, i32, i32
  }
  func.func @transform_1(%arg0: i32) -> (i32, i32, i32) {
    %c0_i32 = arith.constant 0 : i32
    %c0_i32_0 = arith.constant 0 : i32
    %c0_i32_1 = arith.constant 0 : i32
    return %arg0, %c0_i32, %c0_i32_0 : i32, i32, i32
  }
  func.func @transform_2(%arg0: i32) -> (i32, i32) {
    %c0_i32 = arith.constant 0 : i32
    %c0_i32_0 = arith.constant 0 : i32
    %c0_i32_1 = arith.constant 0 : i32
    return %c0_i32, %c0_i32_0 : i32, i32
  }
  func.func @transform_3(%arg0: i32) -> (i32, i32, i32) {
    %c0_i32 = arith.constant 0 : i32
    %c0_i32_0 = arith.constant 0 : i32
    %c0_i32_1 = arith.constant 0 : i32
    %c0_i32_2 = arith.constant 0 : i32
    return %c0_i32, %c0_i32_0, %c0_i32_1 : i32, i32, i32
  }
  func.func @transform_4(%arg0: i32) -> (i32, i32) {
    %c0_i32 = arith.constant 0 : i32
    %c0_i32_0 = arith.constant 0 : i32
    return %arg0, %c0_i32 : i32, i32
  }
  func.func @transform_5(%arg0: i32) -> (i32, i32) {
    %c0_i32 = arith.constant 0 : i32
    %c0_i32_0 = arith.constant 0 : i32
    return %arg0, %c0_i32 : i32, i32
  }
  func.func @transform_6(%arg0: i32) -> (i32, i32, i32) {
    %c0_i32 = arith.constant 0 : i32
    %c0_i32_0 = arith.constant 0 : i32
    %c0_i32_1 = arith.constant 0 : i32
    return %arg0, %c0_i32, %c0_i32_0 : i32, i32, i32
  }
  func.func @transform_7(%arg0: i32) -> (i32, i32, i32) {
    %c0_i32 = arith.constant 0 : i32
    %c0_i32_0 = arith.constant 0 : i32
    %c0_i32_1 = arith.constant 0 : i32
    return %arg0, %c0_i32, %c0_i32_0 : i32, i32, i32
  }
}

</mosaic_0001>

<llo_original>
// kernel: tap_forward.1
$region0: #{tap_forward.1}
  #allocation0 [shape = 'u32[]', space=smem, size = 0x4, offset = 0x4, fixed_abs, tag = 'smem constant byte address 0x4 - core index']
  #allocation1 [shape = 'u32[144,128]{1,0:T(1,128)}', space=vmem, size = 0x12000, scoped, tag = 'internal scratch']
  %s0 = inlined_call_operand.vmem [shape: bf16[16,8,32], index: 0, kind: input, shape index: {}]
  %s1 = inlined_call_operand.vmem [shape: bf16[16,6,32], index: 1, kind: input, shape index: {}]
  %s2 = inlined_call_operand.vmem [shape: bf16[32,32], index: 2, kind: input, shape index: {}]
  %s3 = inlined_call_operand.vmem [shape: f32[1,1,32], index: 3, kind: input, shape index: {}]
  %s4 = inlined_call_operand.hbm [shape: f32[16,16], index: 4, kind: output, shape index: {0}]
  %s5 = inlined_call_operand.hbm [shape: f32[16,16], index: 5, kind: output, shape index: {1}]
  %s6 = inlined_call_operand.hbm [shape: bf16[16,8,16], index: 6, kind: output, shape index: {2}]
  %s7 = inlined_call_operand.vmem [shape: bf16[16,6,16], index: 7, kind: output, shape index: {3}]
  %8 = xla_tuple %s4, %s5, %s6, %s7
  %s9 = sld [smem:[#allocation0]]
  $region73: #{tap_forward.1} parent=0
    _
  %s11 = ssub.s32 1, %s9
  %s12 = scalar_select 0, %s11, %s9
  $region1: #{tap_forward.1} parent=0
    #allocation2 [shape = 'u8[8192]{0}', space=vmem, size = 0x2000, scoped, tag = 'output window, operand 0']
    #allocation3 [shape = 's32[2]{0}', space=sflag, size = 0x8, scoped, tag = 'scoped memory for tap_forward.1']
    #allocation4 [shape = 'u8[8192]{0}', space=vmem, size = 0x2000, scoped, tag = 'output window, operand 1']
    #allocation5 [shape = 's32[2]{0}', space=sflag, size = 0x8, scoped, tag = 'scoped memory for tap_forward.1']
    #allocation6 [shape = 'u8[32768]{0}', space=vmem, size = 0x8000, scoped, tag = 'output window, operand 2']
    %13 = vsyncpa [#allocation3], 0
    %s14 = scalar_lea.sflag [#allocation3], 1
    %15 = vsyncpa %s14, 0
    %16 = vsyncpa [#allocation5], 0
    %s17 = scalar_lea.sflag [#allocation5], 1
    %18 = vsyncpa %s17, 0
    loop: start=0, step=1, limit=4
    $region2: #{tap_forward.1} parent=1 // loop_pre_header
      _
    $region3: #{tap_forward.1} parent=1 // loop_header
      %s20 = sphi 0, %s24
      %p21 = scmp.ge.s32.totalorder %s20, 4
      %s30 = sphi 0, %s32
      %s33 = sphi 0, %s30
      %s34 = sphi 0, %s33
      %s50 = sphi 0, %s34
      %s56 = sphi 0, %s58
      %s59 = sphi 0, %s56
      %s60 = sphi 0, %s59
      %s76 = sphi 0, %s60
      %s80 = sphi 0, %s80
      %s82 = sphi 0, %s80
      %s83 = sphi 0, %s82
      %s97 = sphi 0, %s83
      %s101 = sphi 0, %s101
      %s103 = sphi 0, %s101
      %s104 = sphi 0, %s103
      %s118 = sphi 0, %s104
      %s124 = sphi 0, %s126
      %s127 = sphi 0, %s124
      %s128 = sphi 0, %s127
      %s144 = sphi 0, %s128
      %s150 = sphi 0, %s152
      %s153 = sphi 0, %s150
      %s154 = sphi 0, %s153
      %s170 = sphi 0, %s154
      %s176 = sphi 0, %s178
      %s179 = sphi 0, %s176
      %s180 = sphi 0, %s179
      %s196 = sphi 0, %s180
      %s202 = sphi 0, %s204
      %s205 = sphi 0, %s202
      %s206 = sphi 0, %s205
      %s222 = sphi 0, %s206
    $region4: #{tap_forward.1} parent=1 // loop_header_branch
      %23 = sbr.rel (%p21) target = $region8
    $region5: #{tap_forward.1} parent=1 // loop_body
      %s25 = ssub.s32 %s20, 1
      %s26 = ssub.s32 %s20, 2
      %s27 = sadd.s32 %s20, 1
      %s28 = ssub.s32 %s20, %s27
      %p29 = scmp.eq.s32.totalorder %s28, 0
      %s31 = sadd.s32 %s30, 1
      %s32 = scalar_select %p29, %s30, %s31
      %p35 = pneg %p29
      %p36 = scmp.eq.s32.totalorder %s20, 1
      %p37 = por %p35, %p36
      %p38 = scmp.ne.s32.totalorder %s30, %s33
      %p39 = scmp.eq.s32.totalorder %s20, 0
      %p40 = por %p38, %p39
      %p41 = scmp.ne.s32.totalorder %s30, %s33
      %p42 = scmp.eq.s32.totalorder %s25, 1
      %p43 = por %p41, %p42
      %p44 = scmp.ne.s32.totalorder %s33, %s34
      %p45 = scmp.eq.s32.totalorder %s25, 0
      %p46 = por %p44, %p45
      %p47 = scmp.ne.s32.totalorder %s33, %s34
      %p48 = scmp.eq.s32.totalorder %s26, 1
      %p49 = por %p47, %p48
      %p51 = scmp.ne.s32.totalorder %s34, %s50
      %p52 = scmp.eq.s32.totalorder %s26, 0
      %p53 = por %p51, %p52
      %s54 = ssub.s32 %s20, %s27
      %p55 = scmp.eq.s32.totalorder %s54, 0
      %s57 = sadd.s32 %s56, 1
      %s58 = scalar_select %p55, %s56, %s57
      %p61 = pneg %p55
      %p62 = scmp.eq.s32.totalorder %s20, 1
      %p63 = por %p61, %p62
      %p64 = scmp.ne.s32.totalorder %s56, %s59
      %p65 = scmp.eq.s32.totalorder %s20, 0
      %p66 = por %p64, %p65
      %p67 = scmp.ne.s32.totalorder %s56, %s59
      %p68 = scmp.eq.s32.totalorder %s25, 1
      %p69 = por %p67, %p68
      %p70 = scmp.ne.s32.totalorder %s59, %s60
      %p71 = scmp.eq.s32.totalorder %s25, 0
      %p72 = por %p70, %p71
      %p73 = scmp.ne.s32.totalorder %s59, %s60
      %p74 = scmp.eq.s32.totalorder %s26, 1
      %p75 = por %p73, %p74
      %p77 = scmp.ne.s32.totalorder %s60, %s76
      %p78 = scmp.eq.s32.totalorder %s26, 0
      %p79 = por %p77, %p78
      %s81 = sadd.s32 %s80, 1
      %p84 = scmp.eq.s32.totalorder %s20, 1
      %p85 = scmp.ne.s32.totalorder %s80, %s82
      %p86 = scmp.eq.s32.totalorder %s20, 0
      %p87 = por %p85, %p86
      %p88 = scmp.ne.s32.totalorder %s80, %s82
      %p89 = scmp.eq.s32.totalorder %s25, 1
      %p90 = por %p88, %p89
      %p91 = scmp.ne.s32.totalorder %s82, %s83
      %p92 = scmp.eq.s32.totalorder %s25, 0
      %p93 = por %p91, %p92
      %p94 = scmp.ne.s32.totalorder %s82, %s83
      %p95 = scmp.eq.s32.totalorder %s26, 1
      %p96 = por %p94, %p95
      %p98 = scmp.ne.s32.totalorder %s83, %s97
      %p99 = scmp.eq.s32.totalorder %s26, 0
      %p100 = por %p98, %p99
      %s102 = sadd.s32 %s101, 1
      %p105 = scmp.eq.s32.totalorder %s20, 1
      %p106 = scmp.ne.s32.totalorder %s101, %s103
      %p107 = scmp.eq.s32.totalorder %s20, 0
      %p108 = por %p106, %p107
      %p109 = scmp.ne.s32.totalorder %s101, %s103
      %p110 = scmp.eq.s32.totalorder %s25, 1
      %p111 = por %p109, %p110
      %p112 = scmp.ne.s32.totalorder %s103, %s104
      %p113 = scmp.eq.s32.totalorder %s25, 0
      %p114 = por %p112, %p113
      %p115 = scmp.ne.s32.totalorder %s103, %s104
      %p116 = scmp.eq.s32.totalorder %s26, 1
      %p117 = por %p115, %p116
      %p119 = scmp.ne.s32.totalorder %s104, %s118
      %p120 = scmp.eq.s32.totalorder %s26, 0
      %p121 = por %p119, %p120
      %s122 = ssub.s32 %s20, %s27
      %p123 = scmp.eq.s32.totalorder %s122, 0
      %s125 = sadd.s32 %s124, 1
      %s126 = scalar_select %p123, %s124, %s125
      %p129 = pneg %p123
      %p130 = scmp.eq.s32.totalorder %s20, 1
      %p131 = por %p129, %p130
      %p132 = scmp.ne.s32.totalorder %s124, %s127
      %p133 = scmp.eq.s32.totalorder %s20, 0
      %p134 = por %p132, %p133
      %p135 = scmp.ne.s32.totalorder %s124, %s127
      %p136 = scmp.eq.s32.totalorder %s25, 1
      %p137 = por %p135, %p136
      %p138 = scmp.ne.s32.totalorder %s127, %s128
      %p139 = scmp.eq.s32.totalorder %s25, 0
      %p140 = por %p138, %p139
      %p141 = scmp.ne.s32.totalorder %s127, %s128
      %p142 = scmp.eq.s32.totalorder %s26, 1
      %p143 = por %p141, %p142
      %p145 = scmp.ne.s32.totalorder %s128, %s144
      %p146 = scmp.eq.s32.totalorder %s26, 0
      %p147 = por %p145, %p146
      %s148 = ssub.s32 %s20, %s27
      %p149 = scmp.eq.s32.totalorder %s148, 0
      %s151 = sadd.s32 %s150, 1
      %s152 = scalar_select %p149, %s150, %s151
      %p155 = pneg %p149
      %p156 = scmp.eq.s32.totalorder %s20, 1
      %p157 = por %p155, %p156
      %p158 = scmp.ne.s32.totalorder %s150, %s153
      %p159 = scmp.eq.s32.totalorder %s20, 0
      %p160 = por %p158, %p159
      %p161 = scmp.ne.s32.totalorder %s150, %s153
      %p162 = scmp.eq.s32.totalorder %s25, 1
      %p163 = por %p161, %p162
      %p164 = scmp.ne.s32.totalorder %s153, %s154
      %p165 = scmp.eq.s32.totalorder %s25, 0
      %p166 = por %p164, %p165
      %p167 = scmp.ne.s32.totalorder %s153, %s154
      %p168 = scmp.eq.s32.totalorder %s26, 1
      %p169 = por %p167, %p168
      %p171 = scmp.ne.s32.totalorder %s154, %s170
      %p172 = scmp.eq.s32.totalorder %s26, 0
      %p173 = por %p171, %p172
      %s174 = ssub.s32 %s20, %s27
      %p175 = scmp.eq.s32.totalorder %s174, 0
      %s177 = sadd.s32 %s176, 1
      %s178 = scalar_select %p175, %s176, %s177
      %p181 = pneg %p175
      %p182 = scmp.eq.s32.totalorder %s20, 1
      %p183 = por %p181, %p182
      %p184 = scmp.ne.s32.totalorder %s176, %s179
      %p185 = scmp.eq.s32.totalorder %s20, 0
      %p186 = por %p184, %p185
      %p187 = scmp.ne.s32.totalorder %s176, %s179
      %p188 = scmp.eq.s32.totalorder %s25, 1
      %p189 = por %p187, %p188
      %p190 = scmp.ne.s32.totalorder %s179, %s180
      %p191 = scmp.eq.s32.totalorder %s25, 0
      %p192 = por %p190, %p191
      %p193 = scmp.ne.s32.totalorder %s179, %s180
      %p194 = scmp.eq.s32.totalorder %s26, 1
      %p195 = por %p193, %p194
      %p197 = scmp.ne.s32.totalorder %s180, %s196
      %p198 = scmp.eq.s32.totalorder %s26, 0
      %p199 = por %p197, %p198
      %s200 = ssub.s32 %s20, %s27
      %p201 = scmp.eq.s32.totalorder %s200, 0
      %s203 = sadd.s32 %s202, 1
      %s204 = scalar_select %p201, %s202, %s203
      %p207 = pneg %p201
      %p208 = scmp.eq.s32.totalorder %s20, 1
      %p209 = por %p207, %p208
      %p210 = scmp.ne.s32.totalorder %s202, %s205
      %p211 = scmp.eq.s32.totalorder %s20, 0
      %p212 = por %p210, %p211
      %p213 = scmp.ne.s32.totalorder %s202, %s205
      %p214 = scmp.eq.s32.totalorder %s25, 1
      %p215 = por %p213, %p214
      %p216 = scmp.ne.s32.totalorder %s205, %s206
      %p217 = scmp.eq.s32.totalorder %s25, 0
      %p218 = por %p216, %p217
      %p219 = scmp.ne.s32.totalorder %s205, %s206
      %p220 = scmp.eq.s32.totalorder %s26, 1
      %p221 = por %p219, %p220
      %p223 = scmp.ne.s32.totalorder %s206, %s222
      %p224 = scmp.eq.s32.totalorder %s26, 0
      %p225 = por %p223, %p224
      %p226 = scmp.le.s32.totalorder 1, %s20
      %p227 = scmp.lt.s32.totalorder %s20, 3
      %p228 = pnand %p226, %p227
      %p229 = pneg %p228
      // Predicated region
      $region9: #{tap_forward.1} parent=5 // pred_check
        _
      $region10: #{tap_forward.1} parent=5 // pred_check_branch
        %231 = sbr.rel (%p228) target = $region12
      $region11: #{tap_forward.1} parent=5 // pred_region
        %s232 = ssub.s32 %s20, 1
        // Predicated region
        $region13: #{tap_forward.1} parent=11 // pred_check
          %p233 = pneg %p93
        $region14: #{tap_forward.1} parent=11 // pred_check_branch
          %235 = sbr.rel (%p233) target = $region16
        $region15: #{tap_forward.1} parent=11 // pred_region
          _
        $region16: #{tap_forward.1} parent=11 // pred_fallthru
          _
        // Predicated region
        $region17: #{tap_forward.1} parent=11 // pred_check
          %p236 = pneg %p114
        $region18: #{tap_forward.1} parent=11 // pred_check_branch
          %238 = sbr.rel (%p236) target = $region20
        $region19: #{tap_forward.1} parent=11 // pred_region
          _
        $region20: #{tap_forward.1} parent=11 // pred_fallthru
          _
      $region12: #{tap_forward.1} parent=5 // pred_fallthru
        _
      %p239 = scmp.lt.s32.totalorder %s20, 2
      // Predicated region
      $region21: #{tap_forward.1} parent=5 // pred_check
        %p240 = pneg %p239
      $region22: #{tap_forward.1} parent=5 // pred_check_branch
        %242 = sbr.rel (%p240) target = $region24
      $region23: #{tap_forward.1} parent=5 // pred_region
        // Predicated region
        $region25: #{tap_forward.1} parent=23 // pred_check
          %p243 = pneg %p40
        $region26: #{tap_forward.1} parent=23 // pred_check_branch
          %245 = sbr.rel (%p243) target = $region28
        $region27: #{tap_forward.1} parent=23 // pred_region
          %s246 = smul.u32 8, %s20
          %p247 = scmp.lt.s32.totalorder %s246, 15
          %s248 = scalar_select %p247, %s246, 15
          %s249 = smul.addr %s248, 4
          %s250 = scalar_lea.vmem %s0, %s249
          %s251 = smul.u32 8, %s20
        $region28: #{tap_forward.1} parent=23 // pred_fallthru
          _
        // Predicated region
        $region29: #{tap_forward.1} parent=23 // pred_check
          %p252 = pneg %p66
        $region30: #{tap_forward.1} parent=23 // pred_check_branch
          %254 = sbr.rel (%p252) target = $region32
        $region31: #{tap_forward.1} parent=23 // pred_region
          %s255 = smul.u32 8, %s20
          %p256 = scmp.lt.s32.totalorder %s255, 15
          %s257 = scalar_select %p256, %s255, 15
          %s258 = smul.addr %s257, 4
          %s259 = scalar_lea.vmem %s1, %s258
          %s260 = smul.u32 8, %s20
        $region32: #{tap_forward.1} parent=23 // pred_fallthru
          _
      $region24: #{tap_forward.1} parent=5 // pred_fallthru
        _
      %p261 = scmp.le.s32.totalorder 1, %s20
      %p262 = scmp.lt.s32.totalorder %s20, 3
      %p263 = pnand %p261, %p262
      %p264 = pneg %p263
      // Predicated region
      $region33: #{tap_forward.1} parent=5 // pred_check
        _
      $region34: #{tap_forward.1} parent=5 // pred_check_branch
        %266 = sbr.rel (%p263) target = $region36
      $region35: #{tap_forward.1} parent=5 // pred_region
        %s267 = ssub.s32 %s20, 1
        %s268 = smul.u32 8, %s25
        %p269 = scmp.lt.s32.totalorder %s268, 15
        %s270 = scalar_select %p269, %s268, 15
        %s271 = smul.addr %s270, 4
        %s272 = scalar_lea.vmem %s0, %s271
        %p273 = pneg %p46
        %p274 = pneg %p43
        %s275 = smul.u32 8, %s25
        %p276 = scmp.lt.s32.totalorder %s275, 15
        %s277 = scalar_select %p276, %s275, 15
        %s278 = smul.addr %s277, 4
        %s279 = scalar_lea.vmem %s1, %s278
        %p280 = pneg %p72
        %p281 = pneg %p69
        %p282 = pneg %p93
        %p283 = pneg %p90
        %p284 = pneg %p114
        %p285 = pneg %p111
        %p286 = pneg %p140
        %p287 = pneg %p137
        %s288 = sand.u32 %s127, 1
        %s289 = scalar_lea.sflag [#allocation3], %s288
        %s290 = sand.u32 %s127, 1
        %s291 = smul.addr %s290, 8
        %s292 = scalar_lea.vmem [#allocation2], %s291
        %p293 = pneg %p166
        %p294 = pneg %p163
        %s295 = sand.u32 %s25, 1
        %s296 = scalar_lea.sflag [#allocation5], %s295
        %s297 = sand.u32 %s153, 1
        %s298 = smul.addr %s297, 8
        %s299 = scalar_lea.vmem [#allocation4], %s298
        %p300 = pneg %p192
        %p301 = pneg %p189
        %s302 = sand.u32 %s25, 1
        %s303 = scalar_lea.sflag [#allocation5], %s302
        %s304 = sand.u32 %s179, 1
        %s305 = smul.addr %s304, 32
        %s306 = scalar_lea.vmem [#allocation6], %s305
        %p307 = pneg %p218
        %p308 = pneg %p215
        %s309 = smul.u32 8, %s25
        %p310 = scmp.lt.s32.totalorder %s309, 15
        %s311 = scalar_select %p310, %s309, 15
        %s312 = smul.addr %s311, 4
        %s313 = scalar_lea.vmem %s7, %s312
        %s314 = smul.u32 8, %s25
        %p315 = scmp.lt.s32.totalorder %s314, 15
        %s316 = scalar_select %p315, %s314, 15
        %s317 = smul.addr %s316, 4
        %s318 = scalar_lea.vmem %s0, %s317
        %s319 = smul.u32 8, %s25
        %s320 = smul.u32 8, %s25
        %p321 = scmp.lt.s32.totalorder %s320, 15
        %s322 = scalar_select %p321, %s320, 15
        %s323 = smul.addr %s322, 4
        %s324 = scalar_lea.vmem %s1, %s323
        %s325 = smul.u32 8, %s25
        %s326 = smul.u32 8, %s25
        %s327 = smul.u32 8, %s25
        %p328 = scmp.lt.s32.totalorder %s327, 15
        %s329 = scalar_select %p328, %s327, 15
        %s330 = smul.addr %s329, 4
        %s331 = scalar_lea.vmem %s7, %s330
        %s332 = smul.u32 8, %s25
        %v334 = vld [vmem:[%s2] sm:$0xf]
        %v335 = vld [vmem:[%s2 + $0x4] sm:$0xf]
        %v336 = vld [vmem:[%s2 + $0x8] sm:$0xf]
        %v337 = vld [vmem:[%s2 + $0xc] sm:$0xf]
        %v338 = vld [vmem:[%s3] sm:$0x1]
        %v339 = vld [vmem:[%s318] sm:$0xf]
        %v340 = vld [vmem:[%s318 + $0x4] sm:$0xf]
        %v341 = vld [vmem:[%s318 + $0x8] sm:$0xf]
        %v342 = vld [vmem:[%s318 + $0xc] sm:$0xf]
        %v343 = vld [vmem:[%s318 + $0x10] sm:$0xf]
        %v344 = vld [vmem:[%s318 + $0x14] sm:$0xf]
        %v345 = vld [vmem:[%s318 + $0x18] sm:$0xf]
        %v346 = vld [vmem:[%s318 + $0x1c] sm:$0xf]
        %v348 = vlaneseq
        %v349 = vshrl.u32 %v348, 7
        %v350 = vsub.s32 0, %v349
        %v351 = vrot.slane %v338, %v350
        %v357 = vunpack.c.l.b16 %v334
        %v358 = vunpack.c.l.b16 %v335
        %v359 = vunpack.c.l.b16 %v336
        %v360 = vunpack.c.l.b16 %v337
        %v361 = vpack.c.b16 %v358, %v357
        %v362 = vpack.c.b16 %v360, %v359
        %vm365 = vcmask 261120
        %v367 = vsel %vm365, %v339, 0
        %369 = vmatprep.subr.bf16.mxu0 0
        %370 = vmatpush1.bf16.msra.mxu0 %v361
        %371 = vmatprep.subr.bf16.mxu0 0
        %372 = vmatpush1.bf16.msra.mxu0 %v362
        %373 = vmatprep.subr.bf16.mxu0 0
        %374 = vmatpush1.bf16.msra.mxu0 0
        %375 = vmatprep.subr.bf16.mxu0 0
        %376 = vmatpush1.bf16.msra.mxu0 0
        %377 = vmatprep.subr.bf16.mxu0 0
        %378 = vmatpush1.bf16.msra.mxu0 0
        %379 = vmatprep.subr.bf16.mxu0 0
        %380 = vmatpush1.bf16.msra.mxu0 0
        %381 = vmatprep.subr.bf16.mxu0 0
        %382 = vmatpush1.bf16.msra.mxu0 0
        %383 = vmatprep.subr.bf16.mxu0 0
        %384 = vmatpush1.bf16.msra.mxu0 0
        %385 = vmatprep.subr.bf16.mxu0 0
        %386 = vmatpush1.bf16.msra.mxu0 0
        %387 = vmatprep.subr.bf16.mxu0 0
        %388 = vmatpush1.bf16.msra.mxu0 0
        %389 = vmatprep.subr.bf16.mxu0 0
        %390 = vmatpush1.bf16.msra.mxu0 0
        %391 = vmatprep.subr.bf16.mxu0 0
        %392 = vmatpush1.bf16.msra.mxu0 0
        %393 = vmatprep.subr.bf16.mxu0 0
        %394 = vmatpush1.bf16.msra.mxu0 0
        %395 = vmatprep.subr.bf16.mxu0 0
        %396 = vmatpush1.bf16.msra.mxu0 0
        %397 = vmatprep.subr.bf16.mxu0 0
        %398 = vmatpush1.bf16.msra.mxu0 0
        %399 = vmatprep.subr.bf16.mxu0 0
        %400 = vmatpush1.bf16.msra.mxu0 0
        %401 = vmatprep.mubr.bf16.mxu0 0
        %402 = vmatmul.mubr.bf16.gmra.mrb[0].mxu0 %v367
        %v403 = vpop.f32.mrb[0].mxu0
        %v404 = vadd.f32 %v351, %v403
        %v405 = vpop.f32.mrb[0].mxu0
        %v406 = vpop.f32.mrb[0].mxu0
        %v407 = vpop.f32.mrb[0].mxu0
        %408 = vdwg.mxu0
        %v410 = vsel %vm365, %v340, 0
        %412 = vmatprep.subr.bf16.mxu0 0
        %413 = vmatpush1.bf16.msra.mxu0 %v361
        %414 = vmatprep.subr.bf16.mxu0 0
        %415 = vmatpush1.bf16.msra.mxu0 %v362
        %416 = vmatprep.subr.bf16.mxu0 0
        %417 = vmatpush1.bf16.msra.mxu0 0
        %418 = vmatprep.subr.bf16.mxu0 0
        %419 = vmatpush1.bf16.msra.mxu0 0
        %420 = vmatprep.subr.bf16.mxu0 0
        %421 = vmatpush1.bf16.msra.mxu0 0
        %422 = vmatprep.subr.bf16.mxu0 0
        %423 = vmatpush1.bf16.msra.mxu0 0
        %424 = vmatprep.subr.bf16.mxu0 0
        %425 = vmatpush1.bf16.msra.mxu0 0
        %426 = vmatprep.subr.bf16.mxu0 0
        %427 = vmatpush1.bf16.msra.mxu0 0
        %428 = vmatprep.subr.bf16.mxu0 0
        %429 = vmatpush1.bf16.msra.mxu0 0
        %430 = vmatprep.subr.bf16.mxu0 0
        %431 = vmatpush1.bf16.msra.mxu0 0
        %432 = vmatprep.subr.bf16.mxu0 0
        %433 = vmatpush1.bf16.msra.mxu0 0
        %434 = vmatprep.subr.bf16.mxu0 0
        %435 = vmatpush1.bf16.msra.mxu0 0
        %436 = vmatprep.subr.bf16.mxu0 0
        %437 = vmatpush1.bf16.msra.mxu0 0
        %438 = vmatprep.subr.bf16.mxu0 0
        %439 = vmatpush1.bf16.msra.mxu0 0
        %440 = vmatprep.subr.bf16.mxu0 0
        %441 = vmatpush1.bf16.msra.mxu0 0
        %442 = vmatprep.subr.bf16.mxu0 0
        %443 = vmatpush1.bf16.msra.mxu0 0
        %444 = vmatprep.mubr.bf16.mxu0 0
        %445 = vmatmul.mubr.bf16.gmra.mrb[0].mxu0 %v410
        %v446 = vpop.f32.mrb[0].mxu0
        %v447 = vadd.f32 %v351, %v446
        %v448 = vpop.f32.mrb[0].mxu0
        %v449 = vpop.f32.mrb[0].mxu0
        %v450 = vpop.f32.mrb[0].mxu0
        %451 = vdwg.mxu0
        %v453 = vsel %vm365, %v341, 0
        %455 = vmatprep.subr.bf16.mxu0 0
        %456 = vmatpush1.bf16.msra.mxu0 %v361
        %457 = vmatprep.subr.bf16.mxu0 0
        %458 = vmatpush1.bf16.msra.mxu0 %v362
        %459 = vmatprep.subr.bf16.mxu0 0
        %460 = vmatpush1.bf16.msra.mxu0 0
        %461 = vmatprep.subr.bf16.mxu0 0
        %462 = vmatpush1.bf16.msra.mxu0 0
        %463 = vmatprep.subr.bf16.mxu0 0
        %464 = vmatpush1.bf16.msra.mxu0 0
        %465 = vmatprep.subr.bf16.mxu0 0
        %466 = vmatpush1.bf16.msra.mxu0 0
        %467 = vmatprep.subr.bf16.mxu0 0
        %468 = vmatpush1.bf16.msra.mxu0 0
        %469 = vmatprep.subr.bf16.mxu0 0
        %470 = vmatpush1.bf16.msra.mxu0 0
        %471 = vmatprep.subr.bf16.mxu0 0
        %472 = vmatpush1.bf16.msra.mxu0 0
        %473 = vmatprep.subr.bf16.mxu0 0
        %474 = vmatpush1.bf16.msra.mxu0 0
        %475 = vmatprep.subr.bf16.mxu0 0
        %476 = vmatpush1.bf16.msra.mxu0 0
        %477 = vmatprep.subr.bf16.mxu0 0
        %478 = vmatpush1.bf16.msra.mxu0 0
        %479 = vmatprep.subr.bf16.mxu0 0
        %480 = vmatpush1.bf16.msra.mxu0 0
        %481 = vmatprep.subr.bf16.mxu0 0
        %482 = vmatpush1.bf16.msra.mxu0 0
        %483 = vmatprep.subr.bf16.mxu0 0
        %484 = vmatpush1.bf16.msra.mxu0 0
        %485 = vmatprep.subr.bf16.mxu0 0
        %486 = vmatpush1.bf16.msra.mxu0 0
        %487 = vmatprep.mubr.bf16.mxu0 0
        %488 = vmatmul.mubr.bf16.gmra.mrb[0].mxu0 %v453
        %v489 = vpop.f32.mrb[0].mxu0
        %v490 = vadd.f32 %v351, %v489
        %v491 = vpop.f32.mrb[0].mxu0
        %v492 = vpop.f32.mrb[0].mxu0
        %v493 = vpop.f32.mrb[0].mxu0
        %494 = vdwg.mxu0
        %v496 = vsel %vm365, %v342, 0
        %498 = vmatprep.subr.bf16.mxu0 0
        %499 = vmatpush1.bf16.msra.mxu0 %v361
        %500 = vmatprep.subr.bf16.mxu0 0
        %501 = vmatpush1.bf16.msra.mxu0 %v362
        %502 = vmatprep.subr.bf16.mxu0 0
        %503 = vmatpush1.bf16.msra.mxu0 0
        %504 = vmatprep.subr.bf16.mxu0 0
        %505 = vmatpush1.bf16.msra.mxu0 0
        %506 = vmatprep.subr.bf16.mxu0 0
        %507 = vmatpush1.bf16.msra.mxu0 0
        %508 = vmatprep.subr.bf16.mxu0 0
        %509 = vmatpush1.bf16.msra.mxu0 0
        %510 = vmatprep.subr.bf16.mxu0 0
        %511 = vmatpush1.bf16.msra.mxu0 0
        %512 = vmatprep.subr.bf16.mxu0 0
        %513 = vmatpush1.bf16.msra.mxu0 0
        %514 = vmatprep.subr.bf16.mxu0 0
        %515 = vmatpush1.bf16.msra.mxu0 0
        %516 = vmatprep.subr.bf16.mxu0 0
        %517 = vmatpush1.bf16.msra.mxu0 0
        %518 = vmatprep.subr.bf16.mxu0 0
        %519 = vmatpush1.bf16.msra.mxu0 0
        %520 = vmatprep.subr.bf16.mxu0 0
        %521 = vmatpush1.bf16.msra.mxu0 0
        %522 = vmatprep.subr.bf16.mxu0 0
        %523 = vmatpush1.bf16.msra.mxu0 0
        %524 = vmatprep.subr.bf16.mxu0 0
        %525 = vmatpush1.bf16.msra.mxu0 0
        %526 = vmatprep.subr.bf16.mxu0 0
        %527 = vmatpush1.bf16.msra.mxu0 0
        %528 = vmatprep.subr.bf16.mxu0 0
        %529 = vmatpush1.bf16.msra.mxu0 0
        %530 = vmatprep.mubr.bf16.mxu0 0
        %531 = vmatmul.mubr.bf16.gmra.mrb[0].mxu0 %v496
        %v532 = vpop.f32.mrb[0].mxu0
        %v533 = vadd.f32 %v351, %v532
        %v534 = vpop.f32.mrb[0].mxu0
        %v535 = vpop.f32.mrb[0].mxu0
        %v536 = vpop.f32.mrb[0].mxu0
        %537 = vdwg.mxu0
        %v539 = vsel %vm365, %v343, 0
        %541 = vmatprep.subr.bf16.mxu0 0
        %542 = vmatpush1.bf16.msra.mxu0 %v361
        %543 = vmatprep.subr.bf16.mxu0 0
        %544 = vmatpush1.bf16.msra.mxu0 %v362
        %545 = vmatprep.subr.bf16.mxu0 0
        %546 = vmatpush1.bf16.msra.mxu0 0
        %547 = vmatprep.subr.bf16.mxu0 0
        %548 = vmatpush1.bf16.msra.mxu0 0
        %549 = vmatprep.subr.bf16.mxu0 0
        %550 = vmatpush1.bf16.msra.mxu0 0
        %551 = vmatprep.subr.bf16.mxu0 0
        %552 = vmatpush1.bf16.msra.mxu0 0
        %553 = vmatprep.subr.bf16.mxu0 0
        %554 = vmatpush1.bf16.msra.mxu0 0
        %555 = vmatprep.subr.bf16.mxu0 0
        %556 = vmatpush1.bf16.msra.mxu0 0
        %557 = vmatprep.subr.bf16.mxu0 0
        %558 = vmatpush1.bf16.msra.mxu0 0
        %559 = vmatprep.subr.bf16.mxu0 0
        %560 = vmatpush1.bf16.msra.mxu0 0
        %561 = vmatprep.subr.bf16.mxu0 0
        %562 = vmatpush1.bf16.msra.mxu0 0
        %563 = vmatprep.subr.bf16.mxu0 0
        %564 = vmatpush1.bf16.msra.mxu0 0
        %565 = vmatprep.subr.bf16.mxu0 0
        %566 = vmatpush1.bf16.msra.mxu0 0
        %567 = vmatprep.subr.bf16.mxu0 0
        %568 = vmatpush1.bf16.msra.mxu0 0
        %569 = vmatprep.subr.bf16.mxu0 0
        %570 = vmatpush1.bf16.msra.mxu0 0
        %571 = vmatprep.subr.bf16.mxu0 0
        %572 = vmatpush1.bf16.msra.mxu0 0
        %573 = vmatprep.mubr.bf16.mxu0 0
        %574 = vmatmul.mubr.bf16.gmra.mrb[0].mxu0 %v539
        %v575 = vpop.f32.mrb[0].mxu0
        %v576 = vadd.f32 %v351, %v575
        %v577 = vpop.f32.mrb[0].mxu0
        %v578 = vpop.f32.mrb[0].mxu0
        %v579 = vpop.f32.mrb[0].mxu0
        %580 = vdwg.mxu0
        %v582 = vsel %vm365, %v344, 0
        %584 = vmatprep.subr.bf16.mxu0 0
        %585 = vmatpush1.bf16.msra.mxu0 %v361
        %586 = vmatprep.subr.bf16.mxu0 0
        %587 = vmatpush1.bf16.msra.mxu0 %v362
        %588 = vmatprep.subr.bf16.mxu0 0
        %589 = vmatpush1.bf16.msra.mxu0 0
        %590 = vmatprep.subr.bf16.mxu0 0
        %591 = vmatpush1.bf16.msra.mxu0 0
        %592 = vmatprep.subr.bf16.mxu0 0
        %593 = vmatpush1.bf16.msra.mxu0 0
        %594 = vmatprep.subr.bf16.mxu0 0
        %595 = vmatpush1.bf16.msra.mxu0 0
        %596 = vmatprep.subr.bf16.mxu0 0
        %597 = vmatpush1.bf16.msra.mxu0 0
        %598 = vmatprep.subr.bf16.mxu0 0
        %599 = vmatpush1.bf16.msra.mxu0 0
        %600 = vmatprep.subr.bf16.mxu0 0
        %601 = vmatpush1.bf16.msra.mxu0 0
        %602 = vmatprep.subr.bf16.mxu0 0
        %603 = vmatpush1.bf16.msra.mxu0 0
        %604 = vmatprep.subr.bf16.mxu0 0
        %605 = vmatpush1.bf16.msra.mxu0 0
        %606 = vmatprep.subr.bf16.mxu0 0
        %607 = vmatpush1.bf16.msra.mxu0 0
        %608 = vmatprep.subr.bf16.mxu0 0
        %609 = vmatpush1.bf16.msra.mxu0 0
        %610 = vmatprep.subr.bf16.mxu0 0
        %611 = vmatpush1.bf16.msra.mxu0 0
        %612 = vmatprep.subr.bf16.mxu0 0
        %613 = vmatpush1.bf16.msra.mxu0 0
        %614 = vmatprep.subr.bf16.mxu0 0
        %615 = vmatpush1.bf16.msra.mxu0 0
        %616 = vmatprep.mubr.bf16.mxu0 0
        %617 = vmatmul.mubr.bf16.gmra.mrb[0].mxu0 %v582
        %v618 = vpop.f32.mrb[0].mxu0
        %v619 = vadd.f32 %v351, %v618
        %v620 = vpop.f32.mrb[0].mxu0
        %v621 = vpop.f32.mrb[0].mxu0
        %v622 = vpop.f32.mrb[0].mxu0
        %623 = vdwg.mxu0
        %v625 = vsel %vm365, %v345, 0
        %627 = vmatprep.subr.bf16.mxu0 0
        %628 = vmatpush1.bf16.msra.mxu0 %v361
        %629 = vmatprep.subr.bf16.mxu0 0
        %630 = vmatpush1.bf16.msra.mxu0 %v362
        %631 = vmatprep.subr.bf16.mxu0 0
        %632 = vmatpush1.bf16.msra.mxu0 0
        %633 = vmatprep.subr.bf16.mxu0 0
        %634 = vmatpush1.bf16.msra.mxu0 0
        %635 = vmatprep.subr.bf16.mxu0 0
        %636 = vmatpush1.bf16.msra.mxu0 0
        %637 = vmatprep.subr.bf16.mxu0 0
        %638 = vmatpush1.bf16.msra.mxu0 0
        %639 = vmatprep.subr.bf16.mxu0 0
        %640 = vmatpush1.bf16.msra.mxu0 0
        %641 = vmatprep.subr.bf16.mxu0 0
        %642 = vmatpush1.bf16.msra.mxu0 0
        %643 = vmatprep.subr.bf16.mxu0 0
        %644 = vmatpush1.bf16.msra.mxu0 0
        %645 = vmatprep.subr.bf16.mxu0 0
        %646 = vmatpush1.bf16.msra.mxu0 0
        %647 = vmatprep.subr.bf16.mxu0 0
        %648 = vmatpush1.bf16.msra.mxu0 0
        %649 = vmatprep.subr.bf16.mxu0 0
        %650 = vmatpush1.bf16.msra.mxu0 0
        %651 = vmatprep.subr.bf16.mxu0 0
        %652 = vmatpush1.bf16.msra.mxu0 0
        %653 = vmatprep.subr.bf16.mxu0 0
        %654 = vmatpush1.bf16.msra.mxu0 0
        %655 = vmatprep.subr.bf16.mxu0 0
        %656 = vmatpush1.bf16.msra.mxu0 0
        %657 = vmatprep.subr.bf16.mxu0 0
        %658 = vmatpush1.bf16.msra.mxu0 0
        %659 = vmatprep.mubr.bf16.mxu0 0
        %660 = vmatmul.mubr.bf16.gmra.mrb[0].mxu0 %v625
        %v661 = vpop.f32.mrb[0].mxu0
        %v662 = vadd.f32 %v351, %v661
        %v663 = vpop.f32.mrb[0].mxu0
        %v664 = vpop.f32.mrb[0].mxu0
        %v665 = vpop.f32.mrb[0].mxu0
        %666 = vdwg.mxu0
        %v668 = vsel %vm365, %v346, 0
        %670 = vmatprep.subr.bf16.mxu0 0
        %671 = vmatpush1.bf16.msra.mxu0 %v361
        %672 = vmatprep.subr.bf16.mxu0 0
        %673 = vmatpush1.bf16.msra.mxu0 %v362
        %674 = vmatprep.subr.bf16.mxu0 0
        %675 = vmatpush1.bf16.msra.mxu0 0
        %676 = vmatprep.subr.bf16.mxu0 0
        %677 = vmatpush1.bf16.msra.mxu0 0
        %678 = vmatprep.subr.bf16.mxu0 0
        %679 = vmatpush1.bf16.msra.mxu0 0
        %680 = vmatprep.subr.bf16.mxu0 0
        %681 = vmatpush1.bf16.msra.mxu0 0
        %682 = vmatprep.subr.bf16.mxu0 0
        %683 = vmatpush1.bf16.msra.mxu0 0
        %684 = vmatprep.subr.bf16.mxu0 0
        %685 = vmatpush1.bf16.msra.mxu0 0
        %686 = vmatprep.subr.bf16.mxu0 0
        %687 = vmatpush1.bf16.msra.mxu0 0
        %688 = vmatprep.subr.bf16.mxu0 0
        %689 = vmatpush1.bf16.msra.mxu0 0
        %690 = vmatprep.subr.bf16.mxu0 0
        %691 = vmatpush1.bf16.msra.mxu0 0
        %692 = vmatprep.subr.bf16.mxu0 0
        %693 = vmatpush1.bf16.msra.mxu0 0
        %694 = vmatprep.subr.bf16.mxu0 0
        %695 = vmatpush1.bf16.msra.mxu0 0
        %696 = vmatprep.subr.bf16.mxu0 0
        %697 = vmatpush1.bf16.msra.mxu0 0
        %698 = vmatprep.subr.bf16.mxu0 0
        %699 = vmatpush1.bf16.msra.mxu0 0
        %700 = vmatprep.subr.bf16.mxu0 0
        %701 = vmatpush1.bf16.msra.mxu0 0
        %702 = vmatprep.mubr.bf16.mxu0 0
        %703 = vmatmul.mubr.bf16.gmra.mrb[0].mxu0 %v668
        %v704 = vpop.f32.mrb[0].mxu0
        %v705 = vadd.f32 %v351, %v704
        %v706 = vpop.f32.mrb[0].mxu0
        %v707 = vpop.f32.mrb[0].mxu0
        %v708 = vpop.f32.mrb[0].mxu0
        %709 = vdwg.mxu0
        %vm710 = vcmask 261248
        %v711 = vsel %vm710, %v404, -inf
        %v712 = vrot.slane %v711, 4
        %v713 = vmax.f32 %v711, %v712
        %v714 = vrot.slane %v713, 2
        %v715 = vmax.f32 %v713, %v714
        %v716 = vrot.slane %v715, 1
        %v717 = vmax.f32 %v715, %v716
        %v718 = vsel %vm710, %v447, -inf
        %v719 = vrot.slane %v718, 4
        %v720 = vmax.f32 %v718, %v719
        %v721 = vrot.slane %v720, 2
        %v722 = vmax.f32 %v720, %v721
        %v723 = vrot.slane %v722, 1
        %v724 = vmax.f32 %v722, %v723
        %v725 = vsel %vm710, %v490, -inf
        %v726 = vrot.slane %v725, 4
        %v727 = vmax.f32 %v725, %v726
        %v728 = vrot.slane %v727, 2
        %v729 = vmax.f32 %v727, %v728
        %v730 = vrot.slane %v729, 1
        %v731 = vmax.f32 %v729, %v730
        %v732 = vsel %vm710, %v533, -inf
        %v733 = vrot.slane %v732, 4
        %v734 = vmax.f32 %v732, %v733
        %v735 = vrot.slane %v734, 2
        %v736 = vmax.f32 %v734, %v735
        %v737 = vrot.slane %v736, 1
        %v738 = vmax.f32 %v736, %v737
        %v739 = vsel %vm710, %v576, -inf
        %v740 = vrot.slane %v739, 4
        %v741 = vmax.f32 %v739, %v740
        %v742 = vrot.slane %v741, 2
        %v743 = vmax.f32 %v741, %v742
        %v744 = vrot.slane %v743, 1
        %v745 = vmax.f32 %v743, %v744
        %v746 = vsel %vm710, %v619, -inf
        %v747 = vrot.slane %v746, 4
        %v748 = vmax.f32 %v746, %v747
        %v749 = vrot.slane %v748, 2
        %v750 = vmax.f32 %v748, %v749
        %v751 = vrot.slane %v750, 1
        %v752 = vmax.f32 %v750, %v751
        %v753 = vsel %vm710, %v662, -inf
        %v754 = vrot.slane %v753, 4
        %v755 = vmax.f32 %v753, %v754
        %v756 = vrot.slane %v755, 2
        %v757 = vmax.f32 %v755, %v756
        %v758 = vrot.slane %v757, 1
        %v759 = vmax.f32 %v757, %v758
        %v760 = vsel %vm710, %v705, -inf
        %v761 = vrot.slane %v760, 4
        %v762 = vmax.f32 %v760, %v761
        %v763 = vrot.slane %v762, 2
        %v764 = vmax.f32 %v762, %v763
        %v765 = vrot.slane %v764, 1
        %v766 = vmax.f32 %v764, %v765
        %v767 = vsub.f32 %v404, %v717
        %v768 = vsub.f32 %v447, %v724
        %v769 = vsub.f32 %v490, %v731
        %v770 = vsub.f32 %v533, %v738
        %v771 = vsub.f32 %v576, %v745
        %v772 = vsub.f32 %v619, %v752
        %v773 = vsub.f32 %v662, %v759
        %v774 = vsub.f32 %v705, %v766
        %v775 = vmul.f32 %v767, 1.442695
        %v776 = vpow.pop %v775
        %v777 = vmul.f32 %v768, 1.442695
        %v778 = vpow.pop %v777
        %v779 = vmul.f32 %v769, 1.442695
        %v780 = vpow.pop %v779
        %v781 = vmul.f32 %v770, 1.442695
        %v782 = vpow.pop %v781
        %v783 = vmul.f32 %v771, 1.442695
        %v784 = vpow.pop %v783
        %v785 = vmul.f32 %v772, 1.442695
        %v786 = vpow.pop %v785
        %v787 = vmul.f32 %v773, 1.442695
        %v788 = vpow.pop %v787
        %v789 = vmul.f32 %v774, 1.442695
        %v790 = vpow.pop %v789
        %v791 = vsel %vm710, %v776, 0.0
        %v792 = vrot.slane %v791, 4
        %v793 = vadd.f32 %v791, %v792
        %v794 = vrot.slane %v793, 2
        %v795 = vadd.f32 %v793, %v794
        %v796 = vrot.slane %v795, 1
        %v797 = vadd.f32 %v795, %v796
        %v798 = vsel %vm710, %v778, 0.0
        %v799 = vrot.slane %v798, 4
        %v800 = vadd.f32 %v798, %v799
        %v801 = vrot.slane %v800, 2
        %v802 = vadd.f32 %v800, %v801
        %v803 = vrot.slane %v802, 1
        %v804 = vadd.f32 %v802, %v803
        %v805 = vsel %vm710, %v780, 0.0
        %v806 = vrot.slane %v805, 4
        %v807 = vadd.f32 %v805, %v806
        %v808 = vrot.slane %v807, 2
        %v809 = vadd.f32 %v807, %v808
        %v810 = vrot.slane %v809, 1
        %v811 = vadd.f32 %v809, %v810
        %v812 = vsel %vm710, %v782, 0.0
        %v813 = vrot.slane %v812, 4
        %v814 = vadd.f32 %v812, %v813
        %v815 = vrot.slane %v814, 2
        %v816 = vadd.f32 %v814, %v815
        %v817 = vrot.slane %v816, 1
        %v818 = vadd.f32 %v816, %v817
        %v819 = vsel %vm710, %v784, 0.0
        %v820 = vrot.slane %v819, 4
        %v821 = vadd.f32 %v819, %v820
        %v822 = vrot.slane %v821, 2
        %v823 = vadd.f32 %v821, %v822
        %v824 = vrot.slane %v823, 1
        %v825 = vadd.f32 %v823, %v824
        %v826 = vsel %vm710, %v786, 0.0
        %v827 = vrot.slane %v826, 4
        %v828 = vadd.f32 %v826, %v827
        %v829 = vrot.slane %v828, 2
        %v830 = vadd.f32 %v828, %v829
        %v831 = vrot.slane %v830, 1
        %v832 = vadd.f32 %v830, %v831
        %v833 = vsel %vm710, %v788, 0.0
        %v834 = vrot.slane %v833, 4
        %v835 = vadd.f32 %v833, %v834
        %v836 = vrot.slane %v835, 2
        %v837 = vadd.f32 %v835, %v836
        %v838 = vrot.slane %v837, 1
        %v839 = vadd.f32 %v837, %v838
        %v840 = vsel %vm710, %v790, 0.0
        %v841 = vrot.slane %v840, 4
        %v842 = vadd.f32 %v840, %v841
        %v843 = vrot.slane %v842, 2
        %v844 = vadd.f32 %v842, %v843
        %v845 = vrot.slane %v844, 1
        %v846 = vadd.f32 %v844, %v845
        %v847 = vrcp.pop %v797
        %v848 = vmul.f32 %v776, %v847
        %v849 = vrcp.pop %v804
        %v850 = vmul.f32 %v778, %v849
        %v851 = vrcp.pop %v811
        %v852 = vmul.f32 %v780, %v851
        %v853 = vrcp.pop %v818
        %v854 = vmul.f32 %v782, %v853
        %v855 = vrcp.pop %v825
        %v856 = vmul.f32 %v784, %v855
        %v857 = vrcp.pop %v832
        %v858 = vmul.f32 %v786, %v857
        %v859 = vrcp.pop %v839
        %v860 = vmul.f32 %v788, %v859
        %v861 = vrcp.pop %v846
        %v862 = vmul.f32 %v790, %v861
        %871 = vrot.lane.b32.xlu0 %v404, 16
        %v872 = vpop.permute.xlu0 %871
        %873 = vrot.lane.b32.xlu0 %v447, 16
        %v874 = vpop.permute.xlu0 %873
        %875 = vrot.lane.b32.xlu0 %v490, 16
        %v876 = vpop.permute.xlu0 %875
        %877 = vrot.lane.b32.xlu0 %v533, 16
        %v878 = vpop.permute.xlu0 %877
        %879 = vrot.lane.b32.xlu0 %v576, 16
        %v880 = vpop.permute.xlu0 %879
        %881 = vrot.lane.b32.xlu0 %v619, 16
        %v882 = vpop.permute.xlu0 %881
        %883 = vrot.lane.b32.xlu0 %v662, 16
        %v884 = vpop.permute.xlu0 %883
        %885 = vrot.lane.b32.xlu0 %v705, 16
        %v886 = vpop.permute.xlu0 %885
        %v895 = vmul.f32 %v848, %v872
        %v896 = vmul.f32 %v850, %v874
        %v897 = vmul.f32 %v852, %v876
        %v898 = vmul.f32 %v854, %v878
        %v899 = vmul.f32 %v856, %v880
        %v900 = vmul.f32 %v858, %v882
        %v901 = vmul.f32 %v860, %v884
        %v902 = vmul.f32 %v862, %v886
        %v903 = vsel %vm710, %v895, 0.0
        %v904 = vrot.slane %v903, 4
        %v905 = vadd.f32 %v903, %v904
        %v906 = vrot.slane %v905, 2
        %v907 = vadd.f32 %v905, %v906
        %v908 = vrot.slane %v907, 1
        %v909 = vadd.f32 %v907, %v908
        %v910 = vsel %vm710, %v896, 0.0
        %v911 = vrot.slane %v910, 4
        %v912 = vadd.f32 %v910, %v911
        %v913 = vrot.slane %v912, 2
        %v914 = vadd.f32 %v912, %v913
        %v915 = vrot.slane %v914, 1
        %v916 = vadd.f32 %v914, %v915
        %v917 = vsel %vm710, %v897, 0.0
        %v918 = vrot.slane %v917, 4
        %v919 = vadd.f32 %v917, %v918
        %v920 = vrot.slane %v919, 2
        %v921 = vadd.f32 %v919, %v920
        %v922 = vrot.slane %v921, 1
        %v923 = vadd.f32 %v921, %v922
        %v924 = vsel %vm710, %v898, 0.0
        %v925 = vrot.slane %v924, 4
        %v926 = vadd.f32 %v924, %v925
        %v927 = vrot.slane %v926, 2
        %v928 = vadd.f32 %v926, %v927
        %v929 = vrot.slane %v928, 1
        %v930 = vadd.f32 %v928, %v929
        %v931 = vsel %vm710, %v899, 0.0
        %v932 = vrot.slane %v931, 4
        %v933 = vadd.f32 %v931, %v932
        %v934 = vrot.slane %v933, 2
        %v935 = vadd.f32 %v933, %v934
        %v936 = vrot.slane %v935, 1
        %v937 = vadd.f32 %v935, %v936
        %v938 = vsel %vm710, %v900, 0.0
        %v939 = vrot.slane %v938, 4
        %v940 = vadd.f32 %v938, %v939
        %v941 = vrot.slane %v940, 2
        %v942 = vadd.f32 %v940, %v941
        %v943 = vrot.slane %v942, 1
        %v944 = vadd.f32 %v942, %v943
        %v945 = vsel %vm710, %v901, 0.0
        %v946 = vrot.slane %v945, 4
        %v947 = vadd.f32 %v945, %v946
        %v948 = vrot.slane %v947, 2
        %v949 = vadd.f32 %v947, %v948
        %v950 = vrot.slane %v949, 1
        %v951 = vadd.f32 %v949, %v950
        %v952 = vsel %vm710, %v902, 0.0
        %v953 = vrot.slane %v952, 4
        %v954 = vadd.f32 %v952, %v953
        %v955 = vrot.slane %v954, 2
        %v956 = vadd.f32 %v954, %v955
        %v957 = vrot.slane %v956, 1
        %v958 = vadd.f32 %v956, %v957
        %vm967 = vcmask 1041409
        %v968 = vsel %vm967, %v916, %v909
        %vm969 = vcmask 1042434
        %v970 = vsel %vm969, %v923, %v968
        %vm971 = vcmask 1043459
        %v972 = vsel %vm971, %v930, %v970
        %vm973 = vcmask 1044484
        %v974 = vsel %vm973, %v937, %v972
        %vm975 = vcmask 1045509
        %v976 = vsel %vm975, %v944, %v974
        %vm977 = vcmask 1046534
        %v978 = vsel %vm977, %v951, %v976
        %vm979 = vcmask 1047559
        %v980 = vsel %vm979, %v958, %v978
        %981 = vrot.lane.b32.xlu0 %v980, 112
        %v982 = vpop.permute.xlu0 %981
        %vm984 = vcmask 130048
        %985 = vst.msk [vmem:[%s292] sm:$0xff] %vm984, %v982
        %v986 = vxor.u32 %v404, 2147483648
        %v987 = vxor.u32 %v447, 2147483648
        %v988 = vxor.u32 %v490, 2147483648
        %v989 = vxor.u32 %v533, 2147483648
        %v990 = vxor.u32 %v576, 2147483648
        %v991 = vxor.u32 %v619, 2147483648
        %v992 = vxor.u32 %v662, 2147483648
        %v993 = vxor.u32 %v705, 2147483648
        %v994 = vmul.f32 %v986, 1.442695
        %v995 = vpow.pop %v994
        %v996 = vmul.f32 %v987, 1.442695
        %v997 = vpow.pop %v996
        %v998 = vmul.f32 %v988, 1.442695
        %v999 = vpow.pop %v998
        %v1000 = vmul.f32 %v989, 1.442695
        %v1001 = vpow.pop %v1000
        %v1002 = vmul.f32 %v990, 1.442695
        %v1003 = vpow.pop %v1002
        %v1004 = vmul.f32 %v991, 1.442695
        %v1005 = vpow.pop %v1004
        %v1006 = vmul.f32 %v992, 1.442695
        %v1007 = vpow.pop %v1006
        %v1008 = vmul.f32 %v993, 1.442695
        %v1009 = vpow.pop %v1008
        %v1010 = vadd.f32 %v995, 1.0
        %v1011 = vadd.f32 %v997, 1.0
        %v1012 = vadd.f32 %v999, 1.0
        %v1013 = vadd.f32 %v1001, 1.0
        %v1014 = vadd.f32 %v1003, 1.0
        %v1015 = vadd.f32 %v1005, 1.0
        %v1016 = vadd.f32 %v1007, 1.0
        %v1017 = vadd.f32 %v1009, 1.0
        %v1018 = vrcp.pop %v1010
        %v1019 = vmul.f32 1.0, %v1018
        %v1020 = vrcp.pop %v1011
        %v1021 = vmul.f32 1.0, %v1020
        %v1022 = vrcp.pop %v1012
        %v1023 = vmul.f32 1.0, %v1022
        %v1024 = vrcp.pop %v1013
        %v1025 = vmul.f32 1.0, %v1024
        %v1026 = vrcp.pop %v1014
        %v1027 = vmul.f32 1.0, %v1026
        %v1028 = vrcp.pop %v1015
        %v1029 = vmul.f32 1.0, %v1028
        %v1030 = vrcp.pop %v1016
        %v1031 = vmul.f32 1.0, %v1030
        %v1032 = vrcp.pop %v1017
        %v1033 = vmul.f32 1.0, %v1032
        %v1034 = vpack.c.bf16 %v1019, %v1019
        %v1035 = vpack.c.bf16 %v1021, %v1021
        %v1036 = vpack.c.bf16 %v1023, %v1023
        %v1037 = vpack.c.bf16 %v1025, %v1025
        %v1038 = vpack.c.bf16 %v1027, %v1027
        %v1039 = vpack.c.bf16 %v1029, %v1029
        %v1040 = vpack.c.bf16 %v1031, %v1031
        %v1041 = vpack.c.bf16 %v1033, %v1033
        %vm1042 = vcmask 125952
        %1043 = vst.msk [vmem:[%s306] sm:$0xf] %vm1042, %v1034
        %1044 = vst.msk [vmem:[%s306 + $0x4] sm:$0xf] %vm1042, %v1035
        %1045 = vst.msk [vmem:[%s306 + $0x8] sm:$0xf] %vm1042, %v1036
        %1046 = vst.msk [vmem:[%s306 + $0xc] sm:$0xf] %vm1042, %v1037
        %1047 = vst.msk [vmem:[%s306 + $0x10] sm:$0xf] %vm1042, %v1038
        %1048 = vst.msk [vmem:[%s306 + $0x14] sm:$0xf] %vm1042, %v1039
        %1049 = vst.msk [vmem:[%s306 + $0x18] sm:$0xf] %vm1042, %v1040
        %1050 = vst.msk [vmem:[%s306 + $0x1c] sm:$0xf] %vm1042, %v1041
        %v1051 = vld [vmem:[%s324] sm:$0x7]
        %v1052 = vld [vmem:[%s324 + $0x4] sm:$0x7]
        %v1053 = vld [vmem:[%s324 + $0x8] sm:$0x7]
        %v1054 = vld [vmem:[%s324 + $0xc] sm:$0x7]
        %v1055 = vld [vmem:[%s324 + $0x10] sm:$0x7]
        %v1056 = vld [vmem:[%s324 + $0x14] sm:$0x7]
        %v1057 = vld [vmem:[%s324 + $0x18] sm:$0x7]
        %v1058 = vld [vmem:[%s324 + $0x1c] sm:$0x7]
        %v1060 = vsel %vm365, %v1051, 0
        %1062 = vmatprep.subr.bf16.mxu0 0
        %1063 = vmatpush1.bf16.msra.mxu0 %v361
        %1064 = vmatprep.subr.bf16.mxu0 0
        %1065 = vmatpush1.bf16.msra.mxu0 %v362
        %1066 = vmatprep.subr.bf16.mxu0 0
        %1067 = vmatpush1.bf16.msra.mxu0 0
        %1068 = vmatprep.subr.bf16.mxu0 0
        %1069 = vmatpush1.bf16.msra.mxu0 0
        %1070 = vmatprep.subr.bf16.mxu0 0
        %1071 = vmatpush1.bf16.msra.mxu0 0
        %1072 = vmatprep.subr.bf16.mxu0 0
        %1073 = vmatpush1.bf16.msra.mxu0 0
        %1074 = vmatprep.subr.bf16.mxu0 0
        %1075 = vmatpush1.bf16.msra.mxu0 0
        %1076 = vmatprep.subr.bf16.mxu0 0
        %1077 = vmatpush1.bf16.msra.mxu0 0
        %1078 = vmatprep.subr.bf16.mxu0 0
        %1079 = vmatpush1.bf16.msra.mxu0 0
        %1080 = vmatprep.subr.bf16.mxu0 0
        %1081 = vmatpush1.bf16.msra.mxu0 0
        %1082 = vmatprep.subr.bf16.mxu0 0
        %1083 = vmatpush1.bf16.msra.mxu0 0
        %1084 = vmatprep.subr.bf16.mxu0 0
        %1085 = vmatpush1.bf16.msra.mxu0 0
        %1086 = vmatprep.subr.bf16.mxu0 0
        %1087 = vmatpush1.bf16.msra.mxu0 0
        %1088 = vmatprep.subr.bf16.mxu0 0
        %1089 = vmatpush1.bf16.msra.mxu0 0
        %1090 = vmatprep.subr.bf16.mxu0 0
        %1091 = vmatpush1.bf16.msra.mxu0 0
        %1092 = vmatprep.subr.bf16.mxu0 0
        %1093 = vmatpush1.bf16.msra.mxu0 0
        %1094 = vmatprep.mubr.bf16.mxu0 0
        %1095 = vmatmul.mubr.bf16.gmra.mrb[0].mxu0 %v1060
        %v1096 = vpop.f32.mrb[0].mxu0
        %v1097 = vadd.f32 %v351, %v1096
        %v1098 = vpop.f32.mrb[0].mxu0
        %v1099 = vpop.f32.mrb[0].mxu0
        %v1100 = vpop.f32.mrb[0].mxu0
        %1101 = vdwg.mxu0
        %v1103 = vsel %vm365, %v1052, 0
        %1105 = vmatprep.subr.bf16.mxu0 0
        %1106 = vmatpush1.bf16.msra.mxu0 %v361
        %1107 = vmatprep.subr.bf16.mxu0 0
        %1108 = vmatpush1.bf16.msra.mxu0 %v362
        %1109 = vmatprep.subr.bf16.mxu0 0
        %1110 = vmatpush1.bf16.msra.mxu0 0
        %1111 = vmatprep.subr.bf16.mxu0 0
        %1112 = vmatpush1.bf16.msra.mxu0 0
        %1113 = vmatprep.subr.bf16.mxu0 0
        %1114 = vmatpush1.bf16.msra.mxu0 0
        %1115 = vmatprep.subr.bf16.mxu0 0
        %1116 = vmatpush1.bf16.msra.mxu0 0
        %1117 = vmatprep.subr.bf16.mxu0 0
        %1118 = vmatpush1.bf16.msra.mxu0 0
        %1119 = vmatprep.subr.bf16.mxu0 0
        %1120 = vmatpush1.bf16.msra.mxu0 0
        %1121 = vmatprep.subr.bf16.mxu0 0
        %1122 = vmatpush1.bf16.msra.mxu0 0
        %1123 = vmatprep.subr.bf16.mxu0 0
        %1124 = vmatpush1.bf16.msra.mxu0 0
        %1125 = vmatprep.subr.bf16.mxu0 0
        %1126 = vmatpush1.bf16.msra.mxu0 0
        %1127 = vmatprep.subr.bf16.mxu0 0
        %1128 = vmatpush1.bf16.msra.mxu0 0
        %1129 = vmatprep.subr.bf16.mxu0 0
        %1130 = vmatpush1.bf16.msra.mxu0 0
        %1131 = vmatprep.subr.bf16.mxu0 0
        %1132 = vmatpush1.bf16.msra.mxu0 0
        %1133 = vmatprep.subr.bf16.mxu0 0
        %1134 = vmatpush1.bf16.msra.mxu0 0
        %1135 = vmatprep.subr.bf16.mxu0 0
        %1136 = vmatpush1.bf16.msra.mxu0 0
        %1137 = vmatprep.mubr.bf16.mxu0 0
        %1138 = vmatmul.mubr.bf16.gmra.mrb[0].mxu0 %v1103
        %v1139 = vpop.f32.mrb[0].mxu0
        %v1140 = vadd.f32 %v351, %v1139
        %v1141 = vpop.f32.mrb[0].mxu0
        %v1142 = vpop.f32.mrb[0].mxu0
        %v1143 = vpop.f32.mrb[0].mxu0
        %1144 = vdwg.mxu0
        %v1146 = vsel %vm365, %v1053, 0
        %1148 = vmatprep.subr.bf16.mxu0 0
        %1149 = vmatpush1.bf16.msra.mxu0 %v361
        %1150 = vmatprep.subr.bf16.mxu0 0
        %1151 = vmatpush1.bf16.msra.mxu0 %v362
        %1152 = vmatprep.subr.bf16.mxu0 0
        %1153 = vmatpush1.bf16.msra.mxu0 0
        %1154 = vmatprep.subr.bf16.mxu0 0
        %1155 = vmatpush1.bf16.msra.mxu0 0
        %1156 = vmatprep.subr.bf16.mxu0 0
        %1157 = vmatpush1.bf16.msra.mxu0 0
        %1158 = vmatprep.subr.bf16.mxu0 0
        %1159 = vmatpush1.bf16.msra.mxu0 0
        %1160 = vmatprep.subr.bf16.mxu0 0
        %1161 = vmatpush1.bf16.msra.mxu0 0
        %1162 = vmatprep.subr.bf16.mxu0 0
        %1163 = vmatpush1.bf16.msra.mxu0 0
        %1164 = vmatprep.subr.bf16.mxu0 0
        %1165 = vmatpush1.bf16.msra.mxu0 0
        %1166 = vmatprep.subr.bf16.mxu0 0
        %1167 = vmatpush1.bf16.msra.mxu0 0
        %1168 = vmatprep.subr.bf16.mxu0 0
        %1169 = vmatpush1.bf16.msra.mxu0 0
        %1170 = vmatprep.subr.bf16.mxu0 0
        %1171 = vmatpush1.bf16.msra.mxu0 0
        %1172 = vmatprep.subr.bf16.mxu0 0
        %1173 = vmatpush1.bf16.msra.mxu0 0
        %1174 = vmatprep.subr.bf16.mxu0 0
        %1175 = vmatpush1.bf16.msra.mxu0 0
        %1176 = vmatprep.subr.bf16.mxu0 0
        %1177 = vmatpush1.bf16.msra.mxu0 0
        %1178 = vmatprep.subr.bf16.mxu0 0
        %1179 = vmatpush1.bf16.msra.mxu0 0
        %1180 = vmatprep.mubr.bf16.mxu0 0
        %1181 = vmatmul.mubr.bf16.gmra.mrb[0].mxu0 %v1146
        %v1182 = vpop.f32.mrb[0].mxu0
        %v1183 = vadd.f32 %v351, %v1182
        %v1184 = vpop.f32.mrb[0].mxu0
        %v1185 = vpop.f32.mrb[0].mxu0
        %v1186 = vpop.f32.mrb[0].mxu0
        %1187 = vdwg.mxu0
        %v1189 = vsel %vm365, %v1054, 0
        %1191 = vmatprep.subr.bf16.mxu0 0
        %1192 = vmatpush1.bf16.msra.mxu0 %v361
        %1193 = vmatprep.subr.bf16.mxu0 0
        %1194 = vmatpush1.bf16.msra.mxu0 %v362
        %1195 = vmatprep.subr.bf16.mxu0 0
        %1196 = vmatpush1.bf16.msra.mxu0 0
        %1197 = vmatprep.subr.bf16.mxu0 0
        %1198 = vmatpush1.bf16.msra.mxu0 0
        %1199 = vmatprep.subr.bf16.mxu0 0
        %1200 = vmatpush1.bf16.msra.mxu0 0
        %1201 = vmatprep.subr.bf16.mxu0 0
        %1202 = vmatpush1.bf16.msra.mxu0 0
        %1203 = vmatprep.subr.bf16.mxu0 0
        %1204 = vmatpush1.bf16.msra.mxu0 0
        %1205 = vmatprep.subr.bf16.mxu0 0
        %1206 = vmatpush1.bf16.msra.mxu0 0
        %1207 = vmatprep.subr.bf16.mxu0 0
        %1208 = vmatpush1.bf16.msra.mxu0 0
        %1209 = vmatprep.subr.bf16.mxu0 0
        %1210 = vmatpush1.bf16.msra.mxu0 0
        %1211 = vmatprep.subr.bf16.mxu0 0
        %1212 = vmatpush1.bf16.msra.mxu0 0
        %1213 = vmatprep.subr.bf16.mxu0 0
        %1214 = vmatpush1.bf16.msra.mxu0 0
        %1215 = vmatprep.subr.bf16.mxu0 0
        %1216 = vmatpush1.bf16.msra.mxu0 0
        %1217 = vmatprep.subr.bf16.mxu0 0
        %1218 = vmatpush1.bf16.msra.mxu0 0
        %1219 = vmatprep.subr.bf16.mxu0 0
        %1220 = vmatpush1.bf16.msra.mxu0 0
        %1221 = vmatprep.subr.bf16.mxu0 0
        %1222 = vmatpush1.bf16.msra.mxu0 0
        %1223 = vmatprep.mubr.bf16.mxu0 0
        %1224 = vmatmul.mubr.bf16.gmra.mrb[0].mxu0 %v1189
        %v1225 = vpop.f32.mrb[0].mxu0
        %v1226 = vadd.f32 %v351, %v1225
        %v1227 = vpop.f32.mrb[0].mxu0
        %v1228 = vpop.f32.mrb[0].mxu0
        %v1229 = vpop.f32.mrb[0].mxu0
        %1230 = vdwg.mxu0
        %v1232 = vsel %vm365, %v1055, 0
        %1234 = vmatprep.subr.bf16.mxu0 0
        %1235 = vmatpush1.bf16.msra.mxu0 %v361
        %1236 = vmatprep.subr.bf16.mxu0 0
        %1237 = vmatpush1.bf16.msra.mxu0 %v362
        %1238 = vmatprep.subr.bf16.mxu0 0
        %1239 = vmatpush1.bf16.msra.mxu0 0
        %1240 = vmatprep.subr.bf16.mxu0 0
        %1241 = vmatpush1.bf16.msra.mxu0 0
        %1242 = vmatprep.subr.bf16.mxu0 0
        %1243 = vmatpush1.bf16.msra.mxu0 0
        %1244 = vmatprep.subr.bf16.mxu0 0
        %1245 = vmatpush1.bf16.msra.mxu0 0
        %1246 = vmatprep.subr.bf16.mxu0 0
        %1247 = vmatpush1.bf16.msra.mxu0 0
        %1248 = vmatprep.subr.bf16.mxu0 0
        %1249 = vmatpush1.bf16.msra.mxu0 0
        %1250 = vmatprep.subr.bf16.mxu0 0
        %1251 = vmatpush1.bf16.msra.mxu0 0
        %1252 = vmatprep.subr.bf16.mxu0 0
        %1253 = vmatpush1.bf16.msra.mxu0 0
        %1254 = vmatprep.subr.bf16.mxu0 0
        %1255 = vmatpush1.bf16.msra.mxu0 0
        %1256 = vmatprep.subr.bf16.mxu0 0
        %1257 = vmatpush1.bf16.msra.mxu0 0
        %1258 = vmatprep.subr.bf16.mxu0 0
        %1259 = vmatpush1.bf16.msra.mxu0 0
        %1260 = vmatprep.subr.bf16.mxu0 0
        %1261 = vmatpush1.bf16.msra.mxu0 0
        %1262 = vmatprep.subr.bf16.mxu0 0
        %1263 = vmatpush1.bf16.msra.mxu0 0
        %1264 = vmatprep.subr.bf16.mxu0 0
        %1265 = vmatpush1.bf16.msra.mxu0 0
        %1266 = vmatprep.mubr.bf16.mxu0 0
        %1267 = vmatmul.mubr.bf16.gmra.mrb[0].mxu0 %v1232
        %v1268 = vpop.f32.mrb[0].mxu0
        %v1269 = vadd.f32 %v351, %v1268
        %v1270 = vpop.f32.mrb[0].mxu0
        %v1271 = vpop.f32.mrb[0].mxu0
        %v1272 = vpop.f32.mrb[0].mxu0
        %1273 = vdwg.mxu0
        %v1275 = vsel %vm365, %v1056, 0
        %1277 = vmatprep.subr.bf16.mxu0 0
        %1278 = vmatpush1.bf16.msra.mxu0 %v361
        %1279 = vmatprep.subr.bf16.mxu0 0
        %1280 = vmatpush1.bf16.msra.mxu0 %v362
        %1281 = vmatprep.subr.bf16.mxu0 0
        %1282 = vmatpush1.bf16.msra.mxu0 0
        %1283 = vmatprep.subr.bf16.mxu0 0
        %1284 = vmatpush1.bf16.msra.mxu0 0
        %1285 = vmatprep.subr.bf16.mxu0 0
        %1286 = vmatpush1.bf16.msra.mxu0 0
        %1287 = vmatprep.subr.bf16.mxu0 0
        %1288 = vmatpush1.bf16.msra.mxu0 0
        %1289 = vmatprep.subr.bf16.mxu0 0
        %1290 = vmatpush1.bf16.msra.mxu0 0
        %1291 = vmatprep.subr.bf16.mxu0 0
        %1292 = vmatpush1.bf16.msra.mxu0 0
        %1293 = vmatprep.subr.bf16.mxu0 0
        %1294 = vmatpush1.bf16.msra.mxu0 0
        %1295 = vmatprep.subr.bf16.mxu0 0
        %1296 = vmatpush1.bf16.msra.mxu0 0
        %1297 = vmatprep.subr.bf16.mxu0 0
        %1298 = vmatpush1.bf16.msra.mxu0 0
        %1299 = vmatprep.subr.bf16.mxu0 0
        %1300 = vmatpush1.bf16.msra.mxu0 0
        %1301 = vmatprep.subr.bf16.mxu0 0
        %1302 = vmatpush1.bf16.msra.mxu0 0
        %1303 = vmatprep.subr.bf16.mxu0 0
        %1304 = vmatpush1.bf16.msra.mxu0 0
        %1305 = vmatprep.subr.bf16.mxu0 0
        %1306 = vmatpush1.bf16.msra.mxu0 0
        %1307 = vmatprep.subr.bf16.mxu0 0
        %1308 = vmatpush1.bf16.msra.mxu0 0
        %1309 = vmatprep.mubr.bf16.mxu0 0
        %1310 = vmatmul.mubr.bf16.gmra.mrb[0].mxu0 %v1275
        %v1311 = vpop.f32.mrb[0].mxu0
        %v1312 = vadd.f32 %v351, %v1311
        %v1313 = vpop.f32.mrb[0].mxu0
        %v1314 = vpop.f32.mrb[0].mxu0
        %v1315 = vpop.f32.mrb[0].mxu0
        %1316 = vdwg.mxu0
        %v1318 = vsel %vm365, %v1057, 0
        %1320 = vmatprep.subr.bf16.mxu0 0
        %1321 = vmatpush1.bf16.msra.mxu0 %v361
        %1322 = vmatprep.subr.bf16.mxu0 0
        %1323 = vmatpush1.bf16.msra.mxu0 %v362
        %1324 = vmatprep.subr.bf16.mxu0 0
        %1325 = vmatpush1.bf16.msra.mxu0 0
        %1326 = vmatprep.subr.bf16.mxu0 0
        %1327 = vmatpush1.bf16.msra.mxu0 0
        %1328 = vmatprep.subr.bf16.mxu0 0
        %1329 = vmatpush1.bf16.msra.mxu0 0
        %1330 = vmatprep.subr.bf16.mxu0 0
        %1331 = vmatpush1.bf16.msra.mxu0 0
        %1332 = vmatprep.subr.bf16.mxu0 0
        %1333 = vmatpush1.bf16.msra.mxu0 0
        %1334 = vmatprep.subr.bf16.mxu0 0
        %1335 = vmatpush1.bf16.msra.mxu0 0
        %1336 = vmatprep.subr.bf16.mxu0 0
        %1337 = vmatpush1.bf16.msra.mxu0 0
        %1338 = vmatprep.subr.bf16.mxu0 0
        %1339 = vmatpush1.bf16.msra.mxu0 0
        %1340 = vmatprep.subr.bf16.mxu0 0
        %1341 = vmatpush1.bf16.msra.mxu0 0
        %1342 = vmatprep.subr.bf16.mxu0 0
        %1343 = vmatpush1.bf16.msra.mxu0 0
        %1344 = vmatprep.subr.bf16.mxu0 0
        %1345 = vmatpush1.bf16.msra.mxu0 0
        %1346 = vmatprep.subr.bf16.mxu0 0
        %1347 = vmatpush1.bf16.msra.mxu0 0
        %1348 = vmatprep.subr.bf16.mxu0 0
        %1349 = vmatpush1.bf16.msra.mxu0 0
        %1350 = vmatprep.subr.bf16.mxu0 0
        %1351 = vmatpush1.bf16.msra.mxu0 0
        %1352 = vmatprep.mubr.bf16.mxu0 0
        %1353 = vmatmul.mubr.bf16.gmra.mrb[0].mxu0 %v1318
        %v1354 = vpop.f32.mrb[0].mxu0
        %v1355 = vadd.f32 %v351, %v1354
        %v1356 = vpop.f32.mrb[0].mxu0
        %v1357 = vpop.f32.mrb[0].mxu0
        %v1358 = vpop.f32.mrb[0].mxu0
        %1359 = vdwg.mxu0
        %v1361 = vsel %vm365, %v1058, 0
        %1363 = vmatprep.subr.bf16.mxu0 0
        %1364 = vmatpush1.bf16.msra.mxu0 %v361
        %1365 = vmatprep.subr.bf16.mxu0 0
        %1366 = vmatpush1.bf16.msra.mxu0 %v362
        %1367 = vmatprep.subr.bf16.mxu0 0
        %1368 = vmatpush1.bf16.msra.mxu0 0
        %1369 = vmatprep.subr.bf16.mxu0 0
        %1370 = vmatpush1.bf16.msra.mxu0 0
        %1371 = vmatprep.subr.bf16.mxu0 0
        %1372 = vmatpush1.bf16.msra.mxu0 0
        %1373 = vmatprep.subr.bf16.mxu0 0
        %1374 = vmatpush1.bf16.msra.mxu0 0
        %1375 = vmatprep.subr.bf16.mxu0 0
        %1376 = vmatpush1.bf16.msra.mxu0 0
        %1377 = vmatprep.subr.bf16.mxu0 0
        %1378 = vmatpush1.bf16.msra.mxu0 0
        %1379 = vmatprep.subr.bf16.mxu0 0
        %1380 = vmatpush1.bf16.msra.mxu0 0
        %1381 = vmatprep.subr.bf16.mxu0 0
        %1382 = vmatpush1.bf16.msra.mxu0 0
        %1383 = vmatprep.subr.bf16.mxu0 0
        %1384 = vmatpush1.bf16.msra.mxu0 0
        %1385 = vmatprep.subr.bf16.mxu0 0
        %1386 = vmatpush1.bf16.msra.mxu0 0
        %1387 = vmatprep.subr.bf16.mxu0 0
        %1388 = vmatpush1.bf16.msra.mxu0 0
        %1389 = vmatprep.subr.bf16.mxu0 0
        %1390 = vmatpush1.bf16.msra.mxu0 0
        %1391 = vmatprep.subr.bf16.mxu0 0
        %1392 = vmatpush1.bf16.msra.mxu0 0
        %1393 = vmatprep.subr.bf16.mxu0 0
        %1394 = vmatpush1.bf16.msra.mxu0 0
        %1395 = vmatprep.mubr.bf16.mxu0 0
        %1396 = vmatmul.mubr.bf16.gmra.mrb[0].mxu0 %v1361
        %v1397 = vpop.f32.mrb[0].mxu0
        %v1398 = vadd.f32 %v351, %v1397
        %v1399 = vpop.f32.mrb[0].mxu0
        %v1400 = vpop.f32.mrb[0].mxu0
        %v1401 = vpop.f32.mrb[0].mxu0
        %1402 = vdwg.mxu0
        %vm1403 = vcmask 259200
        %v1404 = vsel %vm1403, %v1097, -inf
        %v1405 = vrot.slane %v1404, 4
        %v1406 = vmax.f32 %v1404, %v1405
        %v1407 = vrot.slane %v1406, 2
        %v1408 = vmax.f32 %v1406, %v1407
        %v1409 = vrot.slane %v1408, 1
        %v1410 = vmax.f32 %v1408, %v1409
        %v1411 = vsel %vm1403, %v1140, -inf
        %v1412 = vrot.slane %v1411, 4
        %v1413 = vmax.f32 %v1411, %v1412
        %v1414 = vrot.slane %v1413, 2
        %v1415 = vmax.f32 %v1413, %v1414
        %v1416 = vrot.slane %v1415, 1
        %v1417 = vmax.f32 %v1415, %v1416
        %v1418 = vsel %vm1403, %v1183, -inf
        %v1419 = vrot.slane %v1418, 4
        %v1420 = vmax.f32 %v1418, %v1419
        %v1421 = vrot.slane %v1420, 2
        %v1422 = vmax.f32 %v1420, %v1421
        %v1423 = vrot.slane %v1422, 1
        %v1424 = vmax.f32 %v1422, %v1423
        %v1425 = vsel %vm1403, %v1226, -inf
        %v1426 = vrot.slane %v1425, 4
        %v1427 = vmax.f32 %v1425, %v1426
        %v1428 = vrot.slane %v1427, 2
        %v1429 = vmax.f32 %v1427, %v1428
        %v1430 = vrot.slane %v1429, 1
        %v1431 = vmax.f32 %v1429, %v1430
        %v1432 = vsel %vm1403, %v1269, -inf
        %v1433 = vrot.slane %v1432, 4
        %v1434 = vmax.f32 %v1432, %v1433
        %v1435 = vrot.slane %v1434, 2
        %v1436 = vmax.f32 %v1434, %v1435
        %v1437 = vrot.slane %v1436, 1
        %v1438 = vmax.f32 %v1436, %v1437
        %v1439 = vsel %vm1403, %v1312, -inf
        %v1440 = vrot.slane %v1439, 4
        %v1441 = vmax.f32 %v1439, %v1440
        %v1442 = vrot.slane %v1441, 2
        %v1443 = vmax.f32 %v1441, %v1442
        %v1444 = vrot.slane %v1443, 1
        %v1445 = vmax.f32 %v1443, %v1444
        %v1446 = vsel %vm1403, %v1355, -inf
        %v1447 = vrot.slane %v1446, 4
        %v1448 = vmax.f32 %v1446, %v1447
        %v1449 = vrot.slane %v1448, 2
        %v1450 = vmax.f32 %v1448, %v1449
        %v1451 = vrot.slane %v1450, 1
        %v1452 = vmax.f32 %v1450, %v1451
        %v1453 = vsel %vm1403, %v1398, -inf
        %v1454 = vrot.slane %v1453, 4
        %v1455 = vmax.f32 %v1453, %v1454
        %v1456 = vrot.slane %v1455, 2
        %v1457 = vmax.f32 %v1455, %v1456
        %v1458 = vrot.slane %v1457, 1
        %v1459 = vmax.f32 %v1457, %v1458
        %v1460 = vsub.f32 %v1097, %v1410
        %v1461 = vsub.f32 %v1140, %v1417
        %v1462 = vsub.f32 %v1183, %v1424
        %v1463 = vsub.f32 %v1226, %v1431
        %v1464 = vsub.f32 %v1269, %v1438
        %v1465 = vsub.f32 %v1312, %v1445
        %v1466 = vsub.f32 %v1355, %v1452
        %v1467 = vsub.f32 %v1398, %v1459
        %v1468 = vmul.f32 %v1460, 1.442695
        %v1469 = vpow.pop %v1468
        %v1470 = vmul.f32 %v1461, 1.442695
        %v1471 = vpow.pop %v1470
        %v1472 = vmul.f32 %v1462, 1.442695
        %v1473 = vpow.pop %v1472
        %v1474 = vmul.f32 %v1463, 1.442695
        %v1475 = vpow.pop %v1474
        %v1476 = vmul.f32 %v1464, 1.442695
        %v1477 = vpow.pop %v1476
        %v1478 = vmul.f32 %v1465, 1.442695
        %v1479 = vpow.pop %v1478
        %v1480 = vmul.f32 %v1466, 1.442695
        %v1481 = vpow.pop %v1480
        %v1482 = vmul.f32 %v1467, 1.442695
        %v1483 = vpow.pop %v1482
        %v1484 = vsel %vm1403, %v1469, 0.0
        %v1485 = vrot.slane %v1484, 4
        %v1486 = vadd.f32 %v1484, %v1485
        %v1487 = vrot.slane %v1486, 2
        %v1488 = vadd.f32 %v1486, %v1487
        %v1489 = vrot.slane %v1488, 1
        %v1490 = vadd.f32 %v1488, %v1489
        %v1491 = vsel %vm1403, %v1471, 0.0
        %v1492 = vrot.slane %v1491, 4
        %v1493 = vadd.f32 %v1491, %v1492
        %v1494 = vrot.slane %v1493, 2
        %v1495 = vadd.f32 %v1493, %v1494
        %v1496 = vrot.slane %v1495, 1
        %v1497 = vadd.f32 %v1495, %v1496
        %v1498 = vsel %vm1403, %v1473, 0.0
        %v1499 = vrot.slane %v1498, 4
        %v1500 = vadd.f32 %v1498, %v1499
        %v1501 = vrot.slane %v1500, 2
        %v1502 = vadd.f32 %v1500, %v1501
        %v1503 = vrot.slane %v1502, 1
        %v1504 = vadd.f32 %v1502, %v1503
        %v1505 = vsel %vm1403, %v1475, 0.0
        %v1506 = vrot.slane %v1505, 4
        %v1507 = vadd.f32 %v1505, %v1506
        %v1508 = vrot.slane %v1507, 2
        %v1509 = vadd.f32 %v1507, %v1508
        %v1510 = vrot.slane %v1509, 1
        %v1511 = vadd.f32 %v1509, %v1510
        %v1512 = vsel %vm1403, %v1477, 0.0
        %v1513 = vrot.slane %v1512, 4
        %v1514 = vadd.f32 %v1512, %v1513
        %v1515 = vrot.slane %v1514, 2
        %v1516 = vadd.f32 %v1514, %v1515
        %v1517 = vrot.slane %v1516, 1
        %v1518 = vadd.f32 %v1516, %v1517
        %v1519 = vsel %vm1403, %v1479, 0.0
        %v1520 = vrot.slane %v1519, 4
        %v1521 = vadd.f32 %v1519, %v1520
        %v1522 = vrot.slane %v1521, 2
        %v1523 = vadd.f32 %v1521, %v1522
        %v1524 = vrot.slane %v1523, 1
        %v1525 = vadd.f32 %v1523, %v1524
        %v1526 = vsel %vm1403, %v1481, 0.0
        %v1527 = vrot.slane %v1526, 4
        %v1528 = vadd.f32 %v1526, %v1527
        %v1529 = vrot.slane %v1528, 2
        %v1530 = vadd.f32 %v1528, %v1529
        %v1531 = vrot.slane %v1530, 1
        %v1532 = vadd.f32 %v1530, %v1531
        %v1533 = vsel %vm1403, %v1483, 0.0
        %v1534 = vrot.slane %v1533, 4
        %v1535 = vadd.f32 %v1533, %v1534
        %v1536 = vrot.slane %v1535, 2
        %v1537 = vadd.f32 %v1535, %v1536
        %v1538 = vrot.slane %v1537, 1
        %v1539 = vadd.f32 %v1537, %v1538
        %v1540 = vrcp.pop %v1490
        %v1541 = vmul.f32 %v1469, %v1540
        %v1542 = vrcp.pop %v1497
        %v1543 = vmul.f32 %v1471, %v1542
        %v1544 = vrcp.pop %v1504
        %v1545 = vmul.f32 %v1473, %v1544
        %v1546 = vrcp.pop %v1511
        %v1547 = vmul.f32 %v1475, %v1546
        %v1548 = vrcp.pop %v1518
        %v1549 = vmul.f32 %v1477, %v1548
        %v1550 = vrcp.pop %v1525
        %v1551 = vmul.f32 %v1479, %v1550
        %v1552 = vrcp.pop %v1532
        %v1553 = vmul.f32 %v1481, %v1552
        %v1554 = vrcp.pop %v1539
        %v1555 = vmul.f32 %v1483, %v1554
        %1564 = vrot.lane.b32.xlu0 %v1097, 16
        %v1565 = vpop.permute.xlu0 %1564
        %1566 = vrot.lane.b32.xlu0 %v1140, 16
        %v1567 = vpop.permute.xlu0 %1566
        %1568 = vrot.lane.b32.xlu0 %v1183, 16
        %v1569 = vpop.permute.xlu0 %1568
        %1570 = vrot.lane.b32.xlu0 %v1226, 16
        %v1571 = vpop.permute.xlu0 %1570
        %1572 = vrot.lane.b32.xlu0 %v1269, 16
        %v1573 = vpop.permute.xlu0 %1572
        %1574 = vrot.lane.b32.xlu0 %v1312, 16
        %v1575 = vpop.permute.xlu0 %1574
        %1576 = vrot.lane.b32.xlu0 %v1355, 16
        %v1577 = vpop.permute.xlu0 %1576
        %1578 = vrot.lane.b32.xlu0 %v1398, 16
        %v1579 = vpop.permute.xlu0 %1578
        %v1588 = vmul.f32 %v1541, %v1565
        %v1589 = vmul.f32 %v1543, %v1567
        %v1590 = vmul.f32 %v1545, %v1569
        %v1591 = vmul.f32 %v1547, %v1571
        %v1592 = vmul.f32 %v1549, %v1573
        %v1593 = vmul.f32 %v1551, %v1575
        %v1594 = vmul.f32 %v1553, %v1577
        %v1595 = vmul.f32 %v1555, %v1579
        %v1596 = vsel %vm1403, %v1588, 0.0
        %v1597 = vrot.slane %v1596, 4
        %v1598 = vadd.f32 %v1596, %v1597
        %v1599 = vrot.slane %v1598, 2
        %v1600 = vadd.f32 %v1598, %v1599
        %v1601 = vrot.slane %v1600, 1
        %v1602 = vadd.f32 %v1600, %v1601
        %v1603 = vsel %vm1403, %v1589, 0.0
        %v1604 = vrot.slane %v1603, 4
        %v1605 = vadd.f32 %v1603, %v1604
        %v1606 = vrot.slane %v1605, 2
        %v1607 = vadd.f32 %v1605, %v1606
        %v1608 = vrot.slane %v1607, 1
        %v1609 = vadd.f32 %v1607, %v1608
        %v1610 = vsel %vm1403, %v1590, 0.0
        %v1611 = vrot.slane %v1610, 4
        %v1612 = vadd.f32 %v1610, %v1611
        %v1613 = vrot.slane %v1612, 2
        %v1614 = vadd.f32 %v1612, %v1613
        %v1615 = vrot.slane %v1614, 1
        %v1616 = vadd.f32 %v1614, %v1615
        %v1617 = vsel %vm1403, %v1591, 0.0
        %v1618 = vrot.slane %v1617, 4
        %v1619 = vadd.f32 %v1617, %v1618
        %v1620 = vrot.slane %v1619, 2
        %v1621 = vadd.f32 %v1619, %v1620
        %v1622 = vrot.slane %v1621, 1
        %v1623 = vadd.f32 %v1621, %v1622
        %v1624 = vsel %vm1403, %v1592, 0.0
        %v1625 = vrot.slane %v1624, 4
        %v1626 = vadd.f32 %v1624, %v1625
        %v1627 = vrot.slane %v1626, 2
        %v1628 = vadd.f32 %v1626, %v1627
        %v1629 = vrot.slane %v1628, 1
        %v1630 = vadd.f32 %v1628, %v1629
        %v1631 = vsel %vm1403, %v1593, 0.0
        %v1632 = vrot.slane %v1631, 4
        %v1633 = vadd.f32 %v1631, %v1632
        %v1634 = vrot.slane %v1633, 2
        %v1635 = vadd.f32 %v1633, %v1634
        %v1636 = vrot.slane %v1635, 1
        %v1637 = vadd.f32 %v1635, %v1636
        %v1638 = vsel %vm1403, %v1594, 0.0
        %v1639 = vrot.slane %v1638, 4
        %v1640 = vadd.f32 %v1638, %v1639
        %v1641 = vrot.slane %v1640, 2
        %v1642 = vadd.f32 %v1640, %v1641
        %v1643 = vrot.slane %v1642, 1
        %v1644 = vadd.f32 %v1642, %v1643
        %v1645 = vsel %vm1403, %v1595, 0.0
        %v1646 = vrot.slane %v1645, 4
        %v1647 = vadd.f32 %v1645, %v1646
        %v1648 = vrot.slane %v1647, 2
        %v1649 = vadd.f32 %v1647, %v1648
        %v1650 = vrot.slane %v1649, 1
        %v1651 = vadd.f32 %v1649, %v1650
        %v1660 = vsel %vm967, %v1609, %v1602
        %v1661 = vsel %vm969, %v1616, %v1660
        %v1662 = vsel %vm971, %v1623, %v1661
        %v1663 = vsel %vm973, %v1630, %v1662
        %v1664 = vsel %vm975, %v1637, %v1663
        %v1665 = vsel %vm977, %v1644, %v1664
        %v1666 = vsel %vm979, %v1651, %v1665
        %1667 = vrot.lane.b32.xlu0 %v1666, 112
        %v1668 = vpop.permute.xlu0 %1667
        %1670 = vst.msk [vmem:[%s299] sm:$0xff] %vm984, %v1668
        %v1671 = vxor.u32 %v1097, 2147483648
        %v1672 = vxor.u32 %v1140, 2147483648
        %v1673 = vxor.u32 %v1183, 2147483648
        %v1674 = vxor.u32 %v1226, 2147483648
        %v1675 = vxor.u32 %v1269, 2147483648
        %v1676 = vxor.u32 %v1312, 2147483648
        %v1677 = vxor.u32 %v1355, 2147483648
        %v1678 = vxor.u32 %v1398, 2147483648
        %v1679 = vmul.f32 %v1671, 1.442695
        %v1680 = vpow.pop %v1679
        %v1681 = vmul.f32 %v1672, 1.442695
        %v1682 = vpow.pop %v1681
        %v1683 = vmul.f32 %v1673, 1.442695
        %v1684 = vpow.pop %v1683
        %v1685 = vmul.f32 %v1674, 1.442695
        %v1686 = vpow.pop %v1685
        %v1687 = vmul.f32 %v1675, 1.442695
        %v1688 = vpow.pop %v1687
        %v1689 = vmul.f32 %v1676, 1.442695
        %v1690 = vpow.pop %v1689
        %v1691 = vmul.f32 %v1677, 1.442695
        %v1692 = vpow.pop %v1691
        %v1693 = vmul.f32 %v1678, 1.442695
        %v1694 = vpow.pop %v1693
        %v1695 = vadd.f32 %v1680, 1.0
        %v1696 = vadd.f32 %v1682, 1.0
        %v1697 = vadd.f32 %v1684, 1.0
        %v1698 = vadd.f32 %v1686, 1.0
        %v1699 = vadd.f32 %v1688, 1.0
        %v1700 = vadd.f32 %v1690, 1.0
        %v1701 = vadd.f32 %v1692, 1.0
        %v1702 = vadd.f32 %v1694, 1.0
        %v1703 = vrcp.pop %v1695
        %v1704 = vmul.f32 1.0, %v1703
        %v1705 = vrcp.pop %v1696
        %v1706 = vmul.f32 1.0, %v1705
        %v1707 = vrcp.pop %v1697
        %v1708 = vmul.f32 1.0, %v1707
        %v1709 = vrcp.pop %v1698
        %v1710 = vmul.f32 1.0, %v1709
        %v1711 = vrcp.pop %v1699
        %v1712 = vmul.f32 1.0, %v1711
        %v1713 = vrcp.pop %v1700
        %v1714 = vmul.f32 1.0, %v1713
        %v1715 = vrcp.pop %v1701
        %v1716 = vmul.f32 1.0, %v1715
        %v1717 = vrcp.pop %v1702
        %v1718 = vmul.f32 1.0, %v1717
        %v1719 = vpack.c.bf16 %v1704, %v1704
        %v1720 = vpack.c.bf16 %v1706, %v1706
        %v1721 = vpack.c.bf16 %v1708, %v1708
        %v1722 = vpack.c.bf16 %v1710, %v1710
        %v1723 = vpack.c.bf16 %v1712, %v1712
        %v1724 = vpack.c.bf16 %v1714, %v1714
        %v1725 = vpack.c.bf16 %v1716, %v1716
        %v1726 = vpack.c.bf16 %v1718, %v1718
        %vm1727 = vcmask 124928
        %1728 = vst.msk [vmem:[%s331] sm:$0x7] %vm1727, %v1719
        %1729 = vst.msk [vmem:[%s331 + $0x4] sm:$0x7] %vm1727, %v1720
        %1730 = vst.msk [vmem:[%s331 + $0x8] sm:$0x7] %vm1727, %v1721
        %1731 = vst.msk [vmem:[%s331 + $0xc] sm:$0x7] %vm1727, %v1722
        %1732 = vst.msk [vmem:[%s331 + $0x10] sm:$0x7] %vm1727, %v1723
        %1733 = vst.msk [vmem:[%s331 + $0x14] sm:$0x7] %vm1727, %v1724
        %1734 = vst.msk [vmem:[%s331 + $0x18] sm:$0x7] %vm1727, %v1725
        %1735 = vst.msk [vmem:[%s331 + $0x1c] sm:$0x7] %vm1727, %v1726
        %s1736 = sand.u32 %s127, 1
        %s1737 = scalar_lea.sflag [#allocation3], %s1736
        %s1738 = sand.u32 %s127, 1
        %s1739 = smul.addr %s1738, 8
        %s1740 = scalar_lea.vmem [#allocation2], %s1739
        %s1741 = sand.u32 %s25, 1
        %s1742 = scalar_lea.sflag [#allocation5], %s1741
        %s1743 = sand.u32 %s153, 1
        %s1744 = smul.addr %s1743, 8
        %s1745 = scalar_lea.vmem [#allocation4], %s1744
        %s1746 = sand.u32 %s25, 1
        %s1747 = scalar_lea.sflag [#allocation5], %s1746
        %s1748 = sand.u32 %s179, 1
        %s1749 = smul.addr %s1748, 32
        %s1750 = scalar_lea.vmem [#allocation6], %s1749
        %s1751 = smul.u32 8, %s25
        %p1752 = scmp.lt.s32.totalorder %s1751, 15
        %s1753 = scalar_select %p1752, %s1751, 15
        %s1754 = smul.addr %s1753, 4
        %s1755 = scalar_lea.vmem %s7, %s1754
        // Predicated region
        $region37: #{tap_forward.1} parent=35 // pred_check
          %p1756 = pneg %p137
        $region38: #{tap_forward.1} parent=35 // pred_check_branch
          %1758 = sbr.rel (%p1756) target = $region40
        $region39: #{tap_forward.1} parent=35 // pred_region
          %s1760 = ssub.s32 128, 128
          %1761 = vsyncadd %s1737, %s1760
          %s1762 = smul.addr %s25, 128
          %s1763 = scalar_lea.hbm %s4, %s1762
          %s1765 = sshll.u32 %s1740, 4
          %s1766 = int_to_ptr.vmem [resolvable:$true] %s1765
          %1768 = dma.vmem_to_hbm [thread:$0]  %s1766, 128, %s1763, %s1737
        $region40: #{tap_forward.1} parent=35 // pred_fallthru
          _
        // Predicated region
        $region41: #{tap_forward.1} parent=35 // pred_check
          %p1769 = pneg %p163
        $region42: #{tap_forward.1} parent=35 // pred_check_branch
          %1771 = sbr.rel (%p1769) target = $region44
        $region43: #{tap_forward.1} parent=35 // pred_region
          %s1773 = ssub.s32 128, 128
          %1774 = vsyncadd %s1742, %s1773
          %s1775 = smul.addr %s25, 128
          %s1776 = scalar_lea.hbm %s5, %s1775
          %s1778 = sshll.u32 %s1745, 4
          %s1779 = int_to_ptr.vmem [resolvable:$true] %s1778
          %1781 = dma.vmem_to_hbm [thread:$0]  %s1779, 128, %s1776, %s1742
        $region44: #{tap_forward.1} parent=35 // pred_fallthru
          _
        // Predicated region
        $region45: #{tap_forward.1} parent=35 // pred_check
          %p1782 = pneg %p189
        $region46: #{tap_forward.1} parent=35 // pred_check_branch
          %1784 = sbr.rel (%p1782) target = $region48
        $region47: #{tap_forward.1} parent=35 // pred_region
          %s1785 = smul.u32 8, %s25
          %s1787 = ssub.s32 512, 512
          %1788 = vsyncadd %s1747, %s1787
          %s1789 = smul.addr %s1785, 64
          %s1790 = scalar_lea.hbm %s6, %s1789
          %s1791 = sshll.u32 %s1750, 4
          %s1792 = int_to_ptr.vmem [resolvable:$true] %s1791
          %1797 = dma.vmem_to_hbm [thread:$0]  %s1792, 512, %s1790, %s1747, 64, 64, 4
        $region48: #{tap_forward.1} parent=35 // pred_fallthru
          _
        // Predicated region
        $region49: #{tap_forward.1} parent=35 // pred_check
          %p1798 = pneg %p215
        $region50: #{tap_forward.1} parent=35 // pred_check_branch
          %1800 = sbr.rel (%p1798) target = $region52
        $region51: #{tap_forward.1} parent=35 // pred_region
          %s1801 = smul.u32 8, %s25
        $region52: #{tap_forward.1} parent=35 // pred_fallthru
          _
      $region36: #{tap_forward.1} parent=5 // pred_fallthru
        _
      %p1802 = scmp.le.s32.totalorder 2, %s20
      // Predicated region
      $region53: #{tap_forward.1} parent=5 // pred_check
        %p1803 = pneg %p1802
      $region54: #{tap_forward.1} parent=5 // pred_check_branch
        %1805 = sbr.rel (%p1803) target = $region56
      $region55: #{tap_forward.1} parent=5 // pred_region
        %s1806 = ssub.s32 %s20, 2
        // Predicated region
        $region57: #{tap_forward.1} parent=55 // pred_check
          %p1807 = pneg %p143
        $region58: #{tap_forward.1} parent=55 // pred_check_branch
          %1809 = sbr.rel (%p1807) target = $region60
        $region59: #{tap_forward.1} parent=55 // pred_region
          %s1810 = sand.u32 %s128, 1
          %s1811 = scalar_lea.sflag [#allocation3], %s1810
          %s1812 = sand.u32 %s128, 1
          %s1813 = smul.addr %s1812, 8
          %s1814 = scalar_lea.vmem [#allocation2], %s1813
          %1815 = dma.done %s1811, 128
        $region60: #{tap_forward.1} parent=55 // pred_fallthru
          _
        // Predicated region
        $region61: #{tap_forward.1} parent=55 // pred_check
          %p1816 = pneg %p169
        $region62: #{tap_forward.1} parent=55 // pred_check_branch
          %1818 = sbr.rel (%p1816) target = $region64
        $region63: #{tap_forward.1} parent=55 // pred_region
          %s1819 = sand.u32 %s26, 1
          %s1820 = scalar_lea.sflag [#allocation5], %s1819
          %s1821 = sand.u32 %s154, 1
          %s1822 = smul.addr %s1821, 8
          %s1823 = scalar_lea.vmem [#allocation4], %s1822
          %1824 = dma.done %s1820, 128
        $region64: #{tap_forward.1} parent=55 // pred_fallthru
          _
        // Predicated region
        $region65: #{tap_forward.1} parent=55 // pred_check
          %p1825 = pneg %p195
        $region66: #{tap_forward.1} parent=55 // pred_check_branch
          %1827 = sbr.rel (%p1825) target = $region68
        $region67: #{tap_forward.1} parent=55 // pred_region
          %s1828 = sand.u32 %s26, 1
          %s1829 = scalar_lea.sflag [#allocation5], %s1828
          %s1830 = sand.u32 %s180, 1
          %s1831 = smul.addr %s1830, 32
          %s1832 = scalar_lea.vmem [#allocation6], %s1831
          %1833 = dma.done %s1829, 512
        $region68: #{tap_forward.1} parent=55 // pred_fallthru
          _
        // Predicated region
        $region69: #{tap_forward.1} parent=55 // pred_check
          %p1834 = pneg %p221
        $region70: #{tap_forward.1} parent=55 // pred_check_branch
          %1836 = sbr.rel (%p1834) target = $region72
        $region71: #{tap_forward.1} parent=55 // pred_region
          %s1837 = smul.u32 8, %s26
          %p1838 = scmp.lt.s32.totalorder %s1837, 15
          %s1839 = scalar_select %p1838, %s1837, 15
          %s1840 = smul.addr %s1839, 4
          %s1841 = scalar_lea.vmem %s7, %s1840
        $region72: #{tap_forward.1} parent=55 // pred_fallthru
          _
      $region56: #{tap_forward.1} parent=5 // pred_fallthru
        _
    $region6: #{tap_forward.1} parent=1 // loop_footer
      %s24 = sadd.s32 1, %s20
    $region7: #{tap_forward.1} parent=1 // loop_footer_branch
      %19 = sbr.rel target = $region3
    $region8: #{tap_forward.1} parent=1 // loop_exit
      _
    %1842 = vsyncpa [#allocation3], 1
    %s1843 = scalar_lea.sflag [#allocation3], 1
    %1844 = vsyncpa %s1843, 1
    %1845 = vsyncpa [#allocation5], 1
    %s1846 = scalar_lea.sflag [#allocation5], 1
    %1847 = vsyncpa %s1846, 1

</llo_original>
